<compile_context>
chip_gen: v6e
topology: v6e:2x2x1
jax: 0.10.0
libtpu: 0.0.40
codegen_flags: <defaults>
</compile_context>

<pallas_src>
import functools
import math

import jax
import jax.numpy as jnp
from jax import lax
from jax.experimental import pallas as pl
from jax.experimental.pallas import tpu as pltpu

_LN_EPS = 1e-5   # torch.nn.LayerNorm default


@functools.lru_cache(maxsize=1)
def _vmem_limit_bytes():
    """Scoped-VMEM limit: ~3/4 of physical VMEM (64 MiB v7x, 128 MiB v5e/v6e)."""
    try:
        cap = getattr(pltpu.get_tpu_info(), "vmem_capacity_bytes", None)
        if cap:
            return int(cap) * 3 // 4
    except Exception:
        pass
    return 48 * 1024 * 1024


def _pick_tile(s, cap):
    """Largest multiple-of-8 tile <= cap that divides s (else the full extent)."""
    if s <= cap:
        return s
    t = (cap // 8) * 8
    while t >= 8:
        if s % t == 0:
            return t
        t -= 8
    return s


# ----------------------------------------------------------------------------
# Kernel 1: fused K/V projection ([ts, D] @ [D, 2D]).
# ----------------------------------------------------------------------------
def _kv_proj_kernel(x_ref, wkv_ref, bkv_ref, k_ref, v_ref, *, d_model):
    x = x_ref[0].astype(jnp.bfloat16)                                   # (ts, D)
    kv = jnp.dot(x, wkv_ref[...],
                 preferred_element_type=jnp.float32) + bkv_ref[...]     # (ts, 2D) f32
    k_ref[0] = kv[:, :d_model].astype(k_ref.dtype)
    v_ref[0] = kv[:, d_model:].astype(v_ref.dtype)


def _kv_projection(x, wkv, bkv, *, seq_tile):
    B, S, D = x.shape
    grid = (B, S // seq_tile)
    tile_spec = pl.BlockSpec((1, seq_tile, D), lambda b, s: (b, s, 0))

    cost = pl.CostEstimate(
        flops=2 * B * S * D * 2 * D,
        transcendentals=0,
        bytes_accessed=(B * S * D * 4 + D * 2 * D * 2 + 2 * D * 4
                        + 2 * B * S * D * 2))

    kernel = functools.partial(_kv_proj_kernel, d_model=D)
    return pl.pallas_call(
        kernel,
        out_shape=tuple(jax.ShapeDtypeStruct((B, S, D), jnp.bfloat16)
                        for _ in range(2)),
        grid_spec=pltpu.PrefetchScalarGridSpec(
            num_scalar_prefetch=0,
            grid=grid,
            in_specs=[tile_spec,
                      pl.BlockSpec((D, 2 * D), lambda b, s: (0, 0)),
                      pl.BlockSpec((1, 2 * D), lambda b, s: (0, 0))],
            out_specs=(tile_spec, tile_spec)),
        compiler_params=pltpu.CompilerParams(
            dimension_semantics=("parallel", "parallel"),
            vmem_limit_bytes=_vmem_limit_bytes()),
        cost_estimate=cost,
    )(x, wkv, bkv)


# ----------------------------------------------------------------------------
# Kernel 2: Q proj + attention + output proj + LayerNorm1 + FFN + LayerNorm2.
# ----------------------------------------------------------------------------
def _attn_ffn_kernel(x_ref, k_ref, v_ref,
                     wq_ref, bq_ref, wo_ref, bo_ref, g1_ref, be1_ref,
                     w1_ref, bf1_ref, w2_ref, bf2_ref, g2_ref, be2_ref,
                     o_ref, ctx_scratch,
                     *, n_heads, d_k, heads_per_group, scale_inv):
    x_res = x_ref[0]                       # (tq, D) f32 residual / Q source
    k = k_ref[0]                           # (S,  D) bf16
    v = v_ref[0]                           # (S,  D) bf16

    # Q projection from the already-resident residual tile (no Q HBM round trip).
    q = (jnp.dot(x_res.astype(jnp.bfloat16), wq_ref[...],
                 preferred_element_type=jnp.float32) + bq_ref[...]
         ).astype(jnp.bfloat16)            # (tq, D)

    # --- multi-head scaled-dot-product attention (heads grouped so each
    #     context write is as lane-dense as possible) --------------------------
    num_groups = n_heads // heads_per_group
    group_w = heads_per_group * d_k
    context = None
    for g in range(num_groups):
        ctxs = []
        for hh in range(heads_per_group):
            h = g * heads_per_group + hh
            sl = slice(h * d_k, (h + 1) * d_k)
            qh = q[:, sl]                                       # (tq, d_k)
            kh = k[:, sl]                                       # (S,  d_k)
            vh = v[:, sl]                                       # (S,  d_k)
            # q . k^T by contracting last-vs-last dims (no transposed K copy).
            scores = lax.dot_general(
                qh, kh, (((1,), (1,)), ((), ())),
                preferred_element_type=jnp.float32) * scale_inv  # (tq, S) f32
            m = jnp.max(scores, axis=-1, keepdims=True)
            e = jnp.exp(scores - m)
            denom = jnp.sum(e, axis=-1, keepdims=True)
            p = (e * pl.reciprocal(denom, approx=True)).astype(jnp.bfloat16)
            # (dropout on attention probabilities == identity in eval mode)
            ctxs.append(jnp.dot(p, vh, preferred_element_type=jnp.float32))
        grp = ctxs[0] if heads_per_group == 1 else jnp.concatenate(ctxs, axis=-1)
        if num_groups == 1:
            context = grp                           # no scratch round trip needed
        else:
            ctx_scratch[:, g * group_w:(g + 1) * group_w] = grp
    if num_groups > 1:
        context = ctx_scratch[...]

    # Output projection over full D at once.
    attn_out = jnp.dot(context.astype(jnp.bfloat16), wo_ref[...],
                       preferred_element_type=jnp.float32) + bo_ref[...]

    # --- residual + LayerNorm 1 ---------------------------------------------
    h1 = x_res + attn_out                            # (dropout == identity)
    mu1 = jnp.mean(h1, axis=-1, keepdims=True)
    var1 = jnp.mean(jnp.square(h1 - mu1), axis=-1, keepdims=True)
    x1 = (h1 - mu1) * lax.rsqrt(var1 + _LN_EPS)
    x1 = x1 * g1_ref[...] + be1_ref[...]

    # --- feed-forward ---------------------------------------------------------
    hff = jnp.dot(x1.astype(jnp.bfloat16), w1_ref[...],
                  preferred_element_type=jnp.float32) + bf1_ref[...]
    hff = jnp.maximum(hff, 0.0)                      # ReLU (dropout == identity)
    ff = jnp.dot(hff.astype(jnp.bfloat16), w2_ref[...],
                 preferred_element_type=jnp.float32) + bf2_ref[...]

    # --- residual + LayerNorm 2 ---------------------------------------------
    h2 = x1 + ff
    mu2 = jnp.mean(h2, axis=-1, keepdims=True)
    var2 = jnp.mean(jnp.square(h2 - mu2), axis=-1, keepdims=True)
    out = (h2 - mu2) * lax.rsqrt(var2 + _LN_EPS)
    out = out * g2_ref[...] + be2_ref[...]
    o_ref[0] = out.astype(o_ref.dtype)


def _attn_ffn(x, k, v, p, *, n_heads, q_tile, heads_per_group):
    B, S, D = x.shape
    d_k = D // n_heads
    d_ff = p["w1"].shape[1]
    grid = (B, S // q_tile)

    tile_spec = pl.BlockSpec((1, q_tile, D), lambda b, t: (b, t, 0))
    full_spec = pl.BlockSpec((1, S, D), lambda b, t: (b, 0, 0))

    def w_spec(shape):
        return pl.BlockSpec(shape, lambda b, t: (0, 0))

    cost = pl.CostEstimate(
        flops=B * (2 * S * D * D            # Q projection
                   + 4 * S * S * D          # scores + attn@V
                   + 2 * S * D * D          # output projection
                   + 4 * S * D * d_ff),     # FFN
        transcendentals=B * (n_heads * S * S + 4 * S),
        bytes_accessed=(B * S * D * 4                 # x (f32)
                        + 2 * B * S * D * 2           # K, V (bf16, per batch elem)
                        + (2 * D * D + 2 * D * d_ff) * 2
                        + (7 * D + d_ff) * 4
                        + B * S * D * 4))             # output (f32)

    kernel = functools.partial(_attn_ffn_kernel, n_heads=n_heads, d_k=d_k,
                               heads_per_group=heads_per_group,
                               scale_inv=1.0 / math.sqrt(d_k))

    return pl.pallas_call(
        kernel,
        out_shape=jax.ShapeDtypeStruct((B, S, D), x.dtype),
        grid_spec=pltpu.PrefetchScalarGridSpec(
            num_scalar_prefetch=0,
            grid=grid,
            in_specs=[tile_spec,            # x residual / Q-source tile
                      full_spec,            # k (full sequence; constant over t)
                      full_spec,            # v
                      w_spec((D, D)),       # wq
                      w_spec((1, D)),       # bq
                      w_spec((D, D)),       # wo
                      w_spec((1, D)),       # bo
                      w_spec((1, D)),       # gamma1
                      w_spec((1, D)),       # beta1
                      w_spec((D, d_ff)),    # w1
                      w_spec((1, d_ff)),    # b1
                      w_spec((d_ff, D)),    # w2
                      w_spec((1, D)),       # b2
                      w_spec((1, D)),       # gamma2
                      w_spec((1, D))],      # beta2
            out_specs=tile_spec,
            scratch_shapes=[pltpu.VMEM((q_tile, D), jnp.float32)]),
        compiler_params=pltpu.CompilerParams(
            dimension_semantics=("parallel", "parallel"),
            vmem_limit_bytes=_vmem_limit_bytes()),
        cost_estimate=cost,
    )(x, k, v,
      p["wq"], p["bq"], p["wo"], p["bo"],
      p["gamma1"], p["beta1"],
      p["w1"], p["b1"], p["w2"], p["b2"],
      p["gamma2"], p["beta2"])


# ----------------------------------------------------------------------------
# Public forward pass.
# ----------------------------------------------------------------------------
def prepare_params(params):
    """One-time (outside jit) weight fusion / reshape so the jitted forward
    does no concatenation or layout work per call.
    NOTE: weights are stored [in, out]; PyTorch nn.Linear weights must be
    transposed (weight.T) before loading into this layout."""
    D = params["wq"].shape[0]

    def row(vec):
        return vec.reshape(1, -1)

    return {
        "wq": params["wq"], "bq": row(params["bq"]),
        "wkv": jnp.concatenate([params["wk"], params["wv"]], axis=1),   # (D, 2D)
        "bkv": jnp.concatenate([params["bk"], params["bv"]]).reshape(1, 2 * D),
        "wo": params["wo"], "bo": row(params["bo"]),
        "w1": params["w1"], "b1": row(params["b1"]),
        "w2": params["w2"], "b2": row(params["b2"]),
        "gamma1": row(params["gamma1"]), "beta1": row(params["beta1"]),
        "gamma2": row(params["gamma2"]), "beta2": row(params["beta2"]),
    }


def encoder_layer(x, prepared, *, n_heads, mask=None):
    """EncoderLayer forward (eval mode). x: [B, S, D] float32."""
    # TODO(synk): attention mask and training-mode dropout are not implemented;
    # this covers the mask=None / eval-mode forward path of the module.
    assert mask is None
    B, S, D = x.shape
    assert D % n_heads == 0
    d_k = D // n_heads

    seq_tile = _pick_tile(S, 512)     # K/V-projection sequence tile
    q_tile = _pick_tile(S, 256)       # query tile (256 fills v6e/v7x 256-wide MXU)

    # Group heads so per-group context writes are lane-dense (width <= 128).
    heads_per_group = 1
    if d_k < 128:
        for g in range(n_heads, 0, -1):
            if n_heads % g == 0 and g * d_k <= 128:
                heads_per_group = g
                break

    k, v = _kv_projection(x, prepared["wkv"], prepared["bkv"], seq_tile=seq_tile)
    return _attn_ffn(x, k, v, prepared, n_heads=n_heads, q_tile=q_tile,
                     heads_per_group=heads_per_group)


# ----------------------------------------------------------------------------
# Parameters + pure-JAX reference + demo.
# ----------------------------------------------------------------------------
def init_params(key, d_model, d_ff):
    """Synthetic parameters: matmul weights in bf16 (MXU operands), rest f32."""
    keys = jax.random.split(key, 16)
    lim = 1.0 / math.sqrt(d_model)
    lim_ff = 1.0 / math.sqrt(d_ff)

    def u(k, shape, l):
        return jax.random.uniform(k, shape, jnp.float32, -l, l)

    return {
        "wq": u(keys[0], (d_model, d_model), lim).astype(jnp.bfloat16),
        "bq": u(keys[1], (d_model,), lim),
        "wk": u(keys[2], (d_model, d_model), lim).astype(jnp.bfloat16),
        "bk": u(keys[3], (d_model,), lim),
        "wv": u(keys[4], (d_model, d_model), lim).astype(jnp.bfloat16),
        "bv": u(keys[5], (d_model,), lim),
        "wo": u(keys[6], (d_model, d_model), lim).astype(jnp.bfloat16),
        "bo": u(keys[7], (d_model,), lim),
        "w1": u(keys[8], (d_model, d_ff), lim).astype(jnp.bfloat16),
        "b1": u(keys[9], (d_ff,), lim),
        "w2": u(keys[10], (d_ff, d_model), lim_ff).astype(jnp.bfloat16),
        "b2": u(keys[11], (d_model,), lim_ff),
        "gamma1": 1.0 + 0.1 * u(keys[12], (d_model,), 1.0),
        "beta1": 0.1 * u(keys[13], (d_model,), 1.0),
        "gamma2": 1.0 + 0.1 * u(keys[14], (d_model,), 1.0),
        "beta2": 0.1 * u(keys[15], (d_model,), 1.0),
    }


def reference(x, params, *, n_heads):
    """Pure-JAX f32 reference of the PyTorch EncoderLayer forward (eval mode)."""
    B, S, D = x.shape
    d_k = D // n_heads

    def f32(a):
        return a.astype(jnp.float32)

    def lin(t, w, b):
        return t @ f32(w) + f32(b)

    def ln(t, g, b):
        mu = t.mean(-1, keepdims=True)
        var = jnp.square(t - mu).mean(-1, keepdims=True)
        return (t - mu) / jnp.sqrt(var + _LN_EPS) * g + b

    def split_heads(t):
        return t.reshape(B, S, n_heads, d_k).transpose(0, 2, 1, 3)

    qh = split_heads(lin(x, params["wq"], params["bq"]))
    kh = split_heads(lin(x, params["wk"], params["bk"]))
    vh = split_heads(lin(x, params["wv"], params["bv"]))
    scores = jnp.einsum("bhqd,bhkd->bhqk", qh, kh) / math.sqrt(d_k)
    attn = jax.nn.softmax(scores, axis=-1)
    ctx = jnp.einsum("bhqk,bhkd->bhqd", attn, vh)
    ctx = ctx.transpose(0, 2, 1, 3).reshape(B, S, D)
    attn_out = lin(ctx, params["wo"], params["bo"])

    x1 = ln(x + attn_out, params["gamma1"], params["beta1"])
    ff = lin(jax.nn.relu(lin(x1, params["w1"], params["b1"])),
             params["w2"], params["b2"])
    return ln(x1 + ff, params["gamma2"], params["beta2"])


if __name__ == "__main__":
    B, S, D, H, DFF = 2, 8, 32, 4, 64   # batch, seq, d_model, n_heads, d_ff

    key = jax.random.PRNGKey(0)
    kx, kp = jax.random.split(key)
    x = jax.random.normal(kx, (B, S, D), jnp.float32)
    params = init_params(kp, D, DFF)

    # Fuse / reshape weights ONCE, outside the jitted forward.
    prepared = prepare_params(params)

    fwd = jax.jit(functools.partial(encoder_layer, n_heads=H))
    out = fwd(x, prepared)
    out = jax.block_until_ready(out)

    ref = reference(x, params, n_heads=H)
    assert out.shape == (B, S, D)
    max_err = float(jnp.max(jnp.abs(out - ref)))
    assert jnp.allclose(out, ref, atol=5e-2, rtol=5e-2), f"max abs err={max_err}"
    print("KERNEL_OK")
</pallas_src>

<mosaic_0001>
module attributes {stable_mosaic.version = 11 : i64} {
  func.func @_attn_ffn_kernel(%arg0: i32, %arg1: i32, %arg2: memref<1x8x32xf32, #tpu.memory_space<vmem>>, %arg3: memref<1x8x32xbf16, #tpu.memory_space<vmem>>, %arg4: memref<1x8x32xbf16, #tpu.memory_space<vmem>>, %arg5: memref<32x32xbf16, #tpu.memory_space<vmem>>, %arg6: memref<1x32xf32, #tpu.memory_space<vmem>>, %arg7: memref<32x32xbf16, #tpu.memory_space<vmem>>, %arg8: memref<1x32xf32, #tpu.memory_space<vmem>>, %arg9: memref<1x32xf32, #tpu.memory_space<vmem>>, %arg10: memref<1x32xf32, #tpu.memory_space<vmem>>, %arg11: memref<32x64xbf16, #tpu.memory_space<vmem>>, %arg12: memref<1x64xf32, #tpu.memory_space<vmem>>, %arg13: memref<64x32xbf16, #tpu.memory_space<vmem>>, %arg14: memref<1x32xf32, #tpu.memory_space<vmem>>, %arg15: memref<1x32xf32, #tpu.memory_space<vmem>>, %arg16: memref<1x32xf32, #tpu.memory_space<vmem>>, %arg17: memref<1x8x32xf32, #tpu.memory_space<vmem>>, %arg18: memref<8x32xf32, #tpu.memory_space<vmem>>) attributes {dimension_semantics = [#tpu.dimension_semantics<parallel>, #tpu.dimension_semantics<parallel>], iteration_bounds = array<i64: 2, 1>, scalar_prefetch = 0 : i64, scratch_operands = 1 : i64, tpu.core_type = #tpu.core_type<tc>, window_params = [{transform_indices = @transform_0, window_bounds = array<i64: 1, 8, 32>}, {transform_indices = @transform_1, window_bounds = array<i64: 1, 8, 32>}, {transform_indices = @transform_2, window_bounds = array<i64: 1, 8, 32>}, {pipeline_mode = #tpu.pipeline_mode<synchronous>, transform_indices = @transform_3, window_bounds = array<i64: 32, 32>}, {pipeline_mode = #tpu.pipeline_mode<synchronous>, transform_indices = @transform_4, window_bounds = array<i64: 1, 32>}, {pipeline_mode = #tpu.pipeline_mode<synchronous>, transform_indices = @transform_5, window_bounds = array<i64: 32, 32>}, {pipeline_mode = #tpu.pipeline_mode<synchronous>, transform_indices = @transform_6, window_bounds = array<i64: 1, 32>}, {pipeline_mode = #tpu.pipeline_mode<synchronous>, transform_indices = @transform_7, window_bounds = array<i64: 1, 32>}, {pipeline_mode = #tpu.pipeline_mode<synchronous>, transform_indices = @transform_8, window_bounds = array<i64: 1, 32>}, {pipeline_mode = #tpu.pipeline_mode<synchronous>, transform_indices = @transform_9, window_bounds = array<i64: 32, 64>}, {pipeline_mode = #tpu.pipeline_mode<synchronous>, transform_indices = @transform_10, window_bounds = array<i64: 1, 64>}, {pipeline_mode = #tpu.pipeline_mode<synchronous>, transform_indices = @transform_11, window_bounds = array<i64: 64, 32>}, {pipeline_mode = #tpu.pipeline_mode<synchronous>, transform_indices = @transform_12, window_bounds = array<i64: 1, 32>}, {pipeline_mode = #tpu.pipeline_mode<synchronous>, transform_indices = @transform_13, window_bounds = array<i64: 1, 32>}, {pipeline_mode = #tpu.pipeline_mode<synchronous>, transform_indices = @transform_14, window_bounds = array<i64: 1, 32>}, {transform_indices = @transform_15, window_bounds = array<i64: 1, 8, 32>}]} {
    %c0 = arith.constant 0 : index
    %c0_0 = arith.constant 0 : index
    %c0_1 = arith.constant 0 : index
    %0 = vector.load %arg2[%c0, %c0_0, %c0_1] : memref<1x8x32xf32, #tpu.memory_space<vmem>>, vector<1x8x32xf32>
    %1 = vector.shape_cast %0 : vector<1x8x32xf32> to vector<8x32xf32>
    %c0_2 = arith.constant 0 : index
    %c0_3 = arith.constant 0 : index
    %c0_4 = arith.constant 0 : index
    %2 = vector.load %arg3[%c0_2, %c0_3, %c0_4] : memref<1x8x32xbf16, #tpu.memory_space<vmem>>, vector<1x8x32xbf16>
    %3 = vector.shape_cast %2 : vector<1x8x32xbf16> to vector<8x32xbf16>
    %c0_5 = arith.constant 0 : index
    %c0_6 = arith.constant 0 : index
    %c0_7 = arith.constant 0 : index
    %4 = vector.load %arg4[%c0_5, %c0_6, %c0_7] : memref<1x8x32xbf16, #tpu.memory_space<vmem>>, vector<1x8x32xbf16>
    %5 = vector.shape_cast %4 : vector<1x8x32xbf16> to vector<8x32xbf16>
    %6 = arith.truncf %1 : vector<8x32xf32> to vector<8x32xbf16>
    %c0_8 = arith.constant 0 : index
    %c0_9 = arith.constant 0 : index
    %7 = vector.load %arg5[%c0_8, %c0_9] : memref<32x32xbf16, #tpu.memory_space<vmem>>, vector<32x32xbf16>
    %cst = arith.constant dense<0.000000e+00> : vector<8x32xf32>
    %8 = tpu.matmul %6, %7, %cst {dimension_numbers = #tpu.dot_dimension_numbers<[1], [0], [0], [1], [0, 0, 1, 1], [], []>} : vector<8x32xbf16>, vector<32x32xbf16>, vector<8x32xf32> -> vector<8x32xf32>
    %c0_10 = arith.constant 0 : index
    %c0_11 = arith.constant 0 : index
    %9 = vector.load %arg6[%c0_10, %c0_11] : memref<1x32xf32, #tpu.memory_space<vmem>>, vector<1x32xf32>
    %10 = vector.broadcast %9 : vector<1x32xf32> to vector<8x32xf32>
    %11 = arith.addf %8, %10 : vector<8x32xf32>
    %12 = arith.truncf %11 : vector<8x32xf32> to vector<8x32xbf16>
    %13 = vector.extract_strided_slice %12 {offsets = [0, 0], sizes = [8, 8], strides = [1, 1]} : vector<8x32xbf16> to vector<8x8xbf16>
    %14 = vector.extract_strided_slice %3 {offsets = [0, 0], sizes = [8, 8], strides = [1, 1]} : vector<8x32xbf16> to vector<8x8xbf16>
    %15 = vector.extract_strided_slice %5 {offsets = [0, 0], sizes = [8, 8], strides = [1, 1]} : vector<8x32xbf16> to vector<8x8xbf16>
    %cst_12 = arith.constant dense<0.000000e+00> : vector<8x8xf32>
    %16 = tpu.matmul %13, %14, %cst_12 {dimension_numbers = #tpu.dot_dimension_numbers<[1], [1], [0], [0], [0, 0, 1, 0], [], []>} : vector<8x8xbf16>, vector<8x8xbf16>, vector<8x8xf32> -> vector<8x8xf32>
    %cst_13 = arith.constant 0.353553385 : f32
    %17 = vector.broadcast %cst_13 : f32 to vector<8x8xf32>
    %18 = arith.mulf %16, %17 : vector<8x8xf32>
    %cst_14 = arith.constant dense<0xFF800000> : vector<8xf32>
    %19 = vector.multi_reduction <maximumf>, %18, %cst_14 [1] : vector<8x8xf32> to vector<8xf32>
    %20 = vector.shape_cast %19 : vector<8xf32> to vector<8x1xf32>
    %21 = vector.broadcast %20 : vector<8x1xf32> to vector<8x8xf32>
    %22 = arith.subf %18, %21 : vector<8x8xf32>
    %23 = math.exp %22 : vector<8x8xf32>
    %cst_15 = arith.constant dense<0.000000e+00> : vector<8xf32>
    %24 = vector.multi_reduction <add>, %23, %cst_15 [1] : vector<8x8xf32> to vector<8xf32>
    %25 = vector.shape_cast %24 : vector<8xf32> to vector<8x1xf32>
    %26 = tpu.reciprocal %25 {approx = true} : vector<8x1xf32> -> vector<8x1xf32>
    %27 = vector.broadcast %26 : vector<8x1xf32> to vector<8x8xf32>
    %28 = arith.mulf %23, %27 : vector<8x8xf32>
    %29 = arith.truncf %28 : vector<8x8xf32> to vector<8x8xbf16>
    %cst_16 = arith.constant dense<0.000000e+00> : vector<8x8xf32>
    %30 = tpu.matmul %29, %15, %cst_16 {dimension_numbers = #tpu.dot_dimension_numbers<[1], [0], [0], [1], [0, 0, 1, 1], [], []>} : vector<8x8xbf16>, vector<8x8xbf16>, vector<8x8xf32> -> vector<8x8xf32>
    %31 = vector.extract_strided_slice %12 {offsets = [0, 8], sizes = [8, 8], strides = [1, 1]} : vector<8x32xbf16> to vector<8x8xbf16>
    %32 = vector.extract_strided_slice %3 {offsets = [0, 8], sizes = [8, 8], strides = [1, 1]} : vector<8x32xbf16> to vector<8x8xbf16>
    %33 = vector.extract_strided_slice %5 {offsets = [0, 8], sizes = [8, 8], strides = [1, 1]} : vector<8x32xbf16> to vector<8x8xbf16>
    %cst_17 = arith.constant dense<0.000000e+00> : vector<8x8xf32>
    %34 = tpu.matmul %31, %32, %cst_17 {dimension_numbers = #tpu.dot_dimension_numbers<[1], [1], [0], [0], [0, 0, 1, 0], [], []>} : vector<8x8xbf16>, vector<8x8xbf16>, vector<8x8xf32> -> vector<8x8xf32>
    %cst_18 = arith.constant 0.353553385 : f32
    %35 = vector.broadcast %cst_18 : f32 to vector<8x8xf32>
    %36 = arith.mulf %34, %35 : vector<8x8xf32>
    %cst_19 = arith.constant dense<0xFF800000> : vector<8xf32>
    %37 = vector.multi_reduction <maximumf>, %36, %cst_19 [1] : vector<8x8xf32> to vector<8xf32>
    %38 = vector.shape_cast %37 : vector<8xf32> to vector<8x1xf32>
    %39 = vector.broadcast %38 : vector<8x1xf32> to vector<8x8xf32>
    %40 = arith.subf %36, %39 : vector<8x8xf32>
    %41 = math.exp %40 : vector<8x8xf32>
    %cst_20 = arith.constant dense<0.000000e+00> : vector<8xf32>
    %42 = vector.multi_reduction <add>, %41, %cst_20 [1] : vector<8x8xf32> to vector<8xf32>
    %43 = vector.shape_cast %42 : vector<8xf32> to vector<8x1xf32>
    %44 = tpu.reciprocal %43 {approx = true} : vector<8x1xf32> -> vector<8x1xf32>
    %45 = vector.broadcast %44 : vector<8x1xf32> to vector<8x8xf32>
    %46 = arith.mulf %41, %45 : vector<8x8xf32>
    %47 = arith.truncf %46 : vector<8x8xf32> to vector<8x8xbf16>
    %cst_21 = arith.constant dense<0.000000e+00> : vector<8x8xf32>
    %48 = tpu.matmul %47, %33, %cst_21 {dimension_numbers = #tpu.dot_dimension_numbers<[1], [0], [0], [1], [0, 0, 1, 1], [], []>} : vector<8x8xbf16>, vector<8x8xbf16>, vector<8x8xf32> -> vector<8x8xf32>
    %49 = vector.extract_strided_slice %12 {offsets = [0, 16], sizes = [8, 8], strides = [1, 1]} : vector<8x32xbf16> to vector<8x8xbf16>
    %50 = vector.extract_strided_slice %3 {offsets = [0, 16], sizes = [8, 8], strides = [1, 1]} : vector<8x32xbf16> to vector<8x8xbf16>
    %51 = vector.extract_strided_slice %5 {offsets = [0, 16], sizes = [8, 8], strides = [1, 1]} : vector<8x32xbf16> to vector<8x8xbf16>
    %cst_22 = arith.constant dense<0.000000e+00> : vector<8x8xf32>
    %52 = tpu.matmul %49, %50, %cst_22 {dimension_numbers = #tpu.dot_dimension_numbers<[1], [1], [0], [0], [0, 0, 1, 0], [], []>} : vector<8x8xbf16>, vector<8x8xbf16>, vector<8x8xf32> -> vector<8x8xf32>
    %cst_23 = arith.constant 0.353553385 : f32
    %53 = vector.broadcast %cst_23 : f32 to vector<8x8xf32>
    %54 = arith.mulf %52, %53 : vector<8x8xf32>
    %cst_24 = arith.constant dense<0xFF800000> : vector<8xf32>
    %55 = vector.multi_reduction <maximumf>, %54, %cst_24 [1] : vector<8x8xf32> to vector<8xf32>
    %56 = vector.shape_cast %55 : vector<8xf32> to vector<8x1xf32>
    %57 = vector.broadcast %56 : vector<8x1xf32> to vector<8x8xf32>
    %58 = arith.subf %54, %57 : vector<8x8xf32>
    %59 = math.exp %58 : vector<8x8xf32>
    %cst_25 = arith.constant dense<0.000000e+00> : vector<8xf32>
    %60 = vector.multi_reduction <add>, %59, %cst_25 [1] : vector<8x8xf32> to vector<8xf32>
    %61 = vector.shape_cast %60 : vector<8xf32> to vector<8x1xf32>
    %62 = tpu.reciprocal %61 {approx = true} : vector<8x1xf32> -> vector<8x1xf32>
    %63 = vector.broadcast %62 : vector<8x1xf32> to vector<8x8xf32>
    %64 = arith.mulf %59, %63 : vector<8x8xf32>
    %65 = arith.truncf %64 : vector<8x8xf32> to vector<8x8xbf16>
    %cst_26 = arith.constant dense<0.000000e+00> : vector<8x8xf32>
    %66 = tpu.matmul %65, %51, %cst_26 {dimension_numbers = #tpu.dot_dimension_numbers<[1], [0], [0], [1], [0, 0, 1, 1], [], []>} : vector<8x8xbf16>, vector<8x8xbf16>, vector<8x8xf32> -> vector<8x8xf32>
    %67 = vector.extract_strided_slice %12 {offsets = [0, 24], sizes = [8, 8], strides = [1, 1]} : vector<8x32xbf16> to vector<8x8xbf16>
    %68 = vector.extract_strided_slice %3 {offsets = [0, 24], sizes = [8, 8], strides = [1, 1]} : vector<8x32xbf16> to vector<8x8xbf16>
    %69 = vector.extract_strided_slice %5 {offsets = [0, 24], sizes = [8, 8], strides = [1, 1]} : vector<8x32xbf16> to vector<8x8xbf16>
    %cst_27 = arith.constant dense<0.000000e+00> : vector<8x8xf32>
    %70 = tpu.matmul %67, %68, %cst_27 {dimension_numbers = #tpu.dot_dimension_numbers<[1], [1], [0], [0], [0, 0, 1, 0], [], []>} : vector<8x8xbf16>, vector<8x8xbf16>, vector<8x8xf32> -> vector<8x8xf32>
    %cst_28 = arith.constant 0.353553385 : f32
    %71 = vector.broadcast %cst_28 : f32 to vector<8x8xf32>
    %72 = arith.mulf %70, %71 : vector<8x8xf32>
    %cst_29 = arith.constant dense<0xFF800000> : vector<8xf32>
    %73 = vector.multi_reduction <maximumf>, %72, %cst_29 [1] : vector<8x8xf32> to vector<8xf32>
    %74 = vector.shape_cast %73 : vector<8xf32> to vector<8x1xf32>
    %75 = vector.broadcast %74 : vector<8x1xf32> to vector<8x8xf32>
    %76 = arith.subf %72, %75 : vector<8x8xf32>
    %77 = math.exp %76 : vector<8x8xf32>
    %cst_30 = arith.constant dense<0.000000e+00> : vector<8xf32>
    %78 = vector.multi_reduction <add>, %77, %cst_30 [1] : vector<8x8xf32> to vector<8xf32>
    %79 = vector.shape_cast %78 : vector<8xf32> to vector<8x1xf32>
    %80 = tpu.reciprocal %79 {approx = true} : vector<8x1xf32> -> vector<8x1xf32>
    %81 = vector.broadcast %80 : vector<8x1xf32> to vector<8x8xf32>
    %82 = arith.mulf %77, %81 : vector<8x8xf32>
    %83 = arith.truncf %82 : vector<8x8xf32> to vector<8x8xbf16>
    %cst_31 = arith.constant dense<0.000000e+00> : vector<8x8xf32>
    %84 = tpu.matmul %83, %69, %cst_31 {dimension_numbers = #tpu.dot_dimension_numbers<[1], [0], [0], [1], [0, 0, 1, 1], [], []>} : vector<8x8xbf16>, vector<8x8xbf16>, vector<8x8xf32> -> vector<8x8xf32>
    %85 = tpu.concatenate %30, %48, %66, %84 in 1 : vector<8x8xf32>, vector<8x8xf32>, vector<8x8xf32>, vector<8x8xf32> -> vector<8x32xf32>
    %86 = arith.truncf %85 : vector<8x32xf32> to vector<8x32xbf16>
    %c0_32 = arith.constant 0 : index
    %c0_33 = arith.constant 0 : index
    %87 = vector.load %arg7[%c0_32, %c0_33] : memref<32x32xbf16, #tpu.memory_space<vmem>>, vector<32x32xbf16>
    %cst_34 = arith.constant dense<0.000000e+00> : vector<8x32xf32>
    %88 = tpu.matmul %86, %87, %cst_34 {dimension_numbers = #tpu.dot_dimension_numbers<[1], [0], [0], [1], [0, 0, 1, 1], [], []>} : vector<8x32xbf16>, vector<32x32xbf16>, vector<8x32xf32> -> vector<8x32xf32>
    %c0_35 = arith.constant 0 : index
    %c0_36 = arith.constant 0 : index
    %89 = vector.load %arg8[%c0_35, %c0_36] : memref<1x32xf32, #tpu.memory_space<vmem>>, vector<1x32xf32>
    %90 = vector.broadcast %89 : vector<1x32xf32> to vector<8x32xf32>
    %91 = arith.addf %88, %90 : vector<8x32xf32>
    %92 = arith.addf %1, %91 : vector<8x32xf32>
    %cst_37 = arith.constant dense<0.000000e+00> : vector<8xf32>
    %93 = vector.multi_reduction <add>, %92, %cst_37 [1] : vector<8x32xf32> to vector<8xf32>
    %94 = vector.shape_cast %93 : vector<8xf32> to vector<8x1xf32>
    %cst_38 = arith.constant 3.200000e+01 : f32
    %95 = vector.broadcast %cst_38 : f32 to vector<8x1xf32>
    %96 = arith.divf %94, %95 : vector<8x1xf32>
    %97 = vector.broadcast %96 : vector<8x1xf32> to vector<8x32xf32>
    %98 = arith.subf %92, %97 : vector<8x32xf32>
    %99 = arith.mulf %98, %98 : vector<8x32xf32>
    %cst_39 = arith.constant dense<0.000000e+00> : vector<8xf32>
    %100 = vector.multi_reduction <add>, %99, %cst_39 [1] : vector<8x32xf32> to vector<8xf32>
    %101 = vector.shape_cast %100 : vector<8xf32> to vector<8x1xf32>
    %cst_40 = arith.constant 3.200000e+01 : f32
    %102 = vector.broadcast %cst_40 : f32 to vector<8x1xf32>
    %103 = arith.divf %101, %102 : vector<8x1xf32>
    %104 = vector.broadcast %96 : vector<8x1xf32> to vector<8x32xf32>
    %105 = arith.subf %92, %104 : vector<8x32xf32>
    %cst_41 = arith.constant 9.99999974E-6 : f32
    %106 = vector.broadcast %cst_41 : f32 to vector<8x1xf32>
    %107 = arith.addf %103, %106 : vector<8x1xf32>
    %108 = math.rsqrt %107 : vector<8x1xf32>
    %109 = vector.broadcast %108 : vector<8x1xf32> to vector<8x32xf32>
    %110 = arith.mulf %105, %109 : vector<8x32xf32>
    %c0_42 = arith.constant 0 : index
    %c0_43 = arith.constant 0 : index
    %111 = vector.load %arg9[%c0_42, %c0_43] : memref<1x32xf32, #tpu.memory_space<vmem>>, vector<1x32xf32>
    %112 = vector.broadcast %111 : vector<1x32xf32> to vector<8x32xf32>
    %113 = arith.mulf %110, %112 : vector<8x32xf32>
    %c0_44 = arith.constant 0 : index
    %c0_45 = arith.constant 0 : index
    %114 = vector.load %arg10[%c0_44, %c0_45] : memref<1x32xf32, #tpu.memory_space<vmem>>, vector<1x32xf32>
    %115 = vector.broadcast %114 : vector<1x32xf32> to vector<8x32xf32>
    %116 = arith.addf %113, %115 : vector<8x32xf32>
    %117 = arith.truncf %116 : vector<8x32xf32> to vector<8x32xbf16>
    %c0_46 = arith.constant 0 : index
    %c0_47 = arith.constant 0 : index
    %118 = vector.load %arg11[%c0_46, %c0_47] : memref<32x64xbf16, #tpu.memory_space<vmem>>, vector<32x64xbf16>
    %cst_48 = arith.constant dense<0.000000e+00> : vector<8x64xf32>
    %119 = tpu.matmul %117, %118, %cst_48 {dimension_numbers = #tpu.dot_dimension_numbers<[1], [0], [0], [1], [0, 0, 1, 1], [], []>} : vector<8x32xbf16>, vector<32x64xbf16>, vector<8x64xf32> -> vector<8x64xf32>
    %c0_49 = arith.constant 0 : index
    %c0_50 = arith.constant 0 : index
    %120 = vector.load %arg12[%c0_49, %c0_50] : memref<1x64xf32, #tpu.memory_space<vmem>>, vector<1x64xf32>
    %121 = vector.broadcast %120 : vector<1x64xf32> to vector<8x64xf32>
    %122 = arith.addf %119, %121 : vector<8x64xf32>
    %cst_51 = arith.constant 0.000000e+00 : f32
    %123 = vector.broadcast %cst_51 : f32 to vector<8x64xf32>
    %124 = arith.maximumf %122, %123 : vector<8x64xf32>
    %125 = arith.truncf %124 : vector<8x64xf32> to vector<8x64xbf16>
    %c0_52 = arith.constant 0 : index
    %c0_53 = arith.constant 0 : index
    %126 = vector.load %arg13[%c0_52, %c0_53] : memref<64x32xbf16, #tpu.memory_space<vmem>>, vector<64x32xbf16>
    %cst_54 = arith.constant dense<0.000000e+00> : vector<8x32xf32>
    %127 = tpu.matmul %125, %126, %cst_54 {dimension_numbers = #tpu.dot_dimension_numbers<[1], [0], [0], [1], [0, 0, 1, 1], [], []>} : vector<8x64xbf16>, vector<64x32xbf16>, vector<8x32xf32> -> vector<8x32xf32>
    %c0_55 = arith.constant 0 : index
    %c0_56 = arith.constant 0 : index
    %128 = vector.load %arg14[%c0_55, %c0_56] : memref<1x32xf32, #tpu.memory_space<vmem>>, vector<1x32xf32>
    %129 = vector.broadcast %128 : vector<1x32xf32> to vector<8x32xf32>
    %130 = arith.addf %127, %129 : vector<8x32xf32>
    %131 = arith.addf %116, %130 : vector<8x32xf32>
    %cst_57 = arith.constant dense<0.000000e+00> : vector<8xf32>
    %132 = vector.multi_reduction <add>, %131, %cst_57 [1] : vector<8x32xf32> to vector<8xf32>
    %133 = vector.shape_cast %132 : vector<8xf32> to vector<8x1xf32>
    %cst_58 = arith.constant 3.200000e+01 : f32
    %134 = vector.broadcast %cst_58 : f32 to vector<8x1xf32>
    %135 = arith.divf %133, %134 : vector<8x1xf32>
    %136 = vector.broadcast %135 : vector<8x1xf32> to vector<8x32xf32>
    %137 = arith.subf %131, %136 : vector<8x32xf32>
    %138 = arith.mulf %137, %137 : vector<8x32xf32>
    %cst_59 = arith.constant dense<0.000000e+00> : vector<8xf32>
    %139 = vector.multi_reduction <add>, %138, %cst_59 [1] : vector<8x32xf32> to vector<8xf32>
    %140 = vector.shape_cast %139 : vector<8xf32> to vector<8x1xf32>
    %cst_60 = arith.constant 3.200000e+01 : f32
    %141 = vector.broadcast %cst_60 : f32 to vector<8x1xf32>
    %142 = arith.divf %140, %141 : vector<8x1xf32>
    %143 = vector.broadcast %135 : vector<8x1xf32> to vector<8x32xf32>
    %144 = arith.subf %131, %143 : vector<8x32xf32>
    %cst_61 = arith.constant 9.99999974E-6 : f32
    %145 = vector.broadcast %cst_61 : f32 to vector<8x1xf32>
    %146 = arith.addf %142, %145 : vector<8x1xf32>
    %147 = math.rsqrt %146 : vector<8x1xf32>
    %148 = vector.broadcast %147 : vector<8x1xf32> to vector<8x32xf32>
    %149 = arith.mulf %144, %148 : vector<8x32xf32>
    %c0_62 = arith.constant 0 : index
    %c0_63 = arith.constant 0 : index
    %150 = vector.load %arg15[%c0_62, %c0_63] : memref<1x32xf32, #tpu.memory_space<vmem>>, vector<1x32xf32>
    %151 = vector.broadcast %150 : vector<1x32xf32> to vector<8x32xf32>
    %152 = arith.mulf %149, %151 : vector<8x32xf32>
    %c0_64 = arith.constant 0 : index
    %c0_65 = arith.constant 0 : index
    %153 = vector.load %arg16[%c0_64, %c0_65] : memref<1x32xf32, #tpu.memory_space<vmem>>, vector<1x32xf32>
    %154 = vector.broadcast %153 : vector<1x32xf32> to vector<8x32xf32>
    %155 = arith.addf %152, %154 : vector<8x32xf32>
    %c0_66 = arith.constant 0 : index
    %c0_67 = arith.constant 0 : index
    %c0_68 = arith.constant 0 : index
    %156 = vector.load %arg17[%c0_66, %c0_67, %c0_68] : memref<1x8x32xf32, #tpu.memory_space<vmem>>, vector<1x8x32xf32>
    %157 = vector.shape_cast %156 : vector<1x8x32xf32> to vector<8x32xf32>
    %158 = vector.shape_cast %155 : vector<8x32xf32> to vector<1x8x32xf32>
    tpu.vector_store %arg17[%c0_66, %c0_67, %c0_68], %158 {strides = array<i32>} : memref<1x8x32xf32, #tpu.memory_space<vmem>>, vector<1x8x32xf32>,
    return
  }
  func.func @transform_0(%arg0: i32, %arg1: i32) -> (i32, i32, i32) {
    %c0_i32 = arith.constant 0 : i32
    %c0_i32_0 = arith.constant 0 : i32
    return %arg0, %arg1, %c0_i32 : i32, i32, i32
  }
  func.func @transform_1(%arg0: i32, %arg1: i32) -> (i32, i32, i32) {
    %c0_i32 = arith.constant 0 : i32
    %c0_i32_0 = arith.constant 0 : i32
    %c0_i32_1 = arith.constant 0 : i32
    return %arg0, %c0_i32, %c0_i32_0 : i32, i32, i32
  }
  func.func @transform_2(%arg0: i32, %arg1: i32) -> (i32, i32, i32) {
    %c0_i32 = arith.constant 0 : i32
    %c0_i32_0 = arith.constant 0 : i32
    %c0_i32_1 = arith.constant 0 : i32
    return %arg0, %c0_i32, %c0_i32_0 : i32, i32, i32
  }
  func.func @transform_3(%arg0: i32, %arg1: i32) -> (i32, i32) {
    %c0_i32 = arith.constant 0 : i32
    %c0_i32_0 = arith.constant 0 : i32
    %c0_i32_1 = arith.constant 0 : i32
    return %c0_i32, %c0_i32_0 : i32, i32
  }
  func.func @transform_4(%arg0: i32, %arg1: i32) -> (i32, i32) {
    %c0_i32 = arith.constant 0 : i32
    %c0_i32_0 = arith.constant 0 : i32
    %c0_i32_1 = arith.constant 0 : i32
    return %c0_i32, %c0_i32_0 : i32, i32
  }
  func.func @transform_5(%arg0: i32, %arg1: i32) -> (i32, i32) {
    %c0_i32 = arith.constant 0 : i32
    %c0_i32_0 = arith.constant 0 : i32
    %c0_i32_1 = arith.constant 0 : i32
    return %c0_i32, %c0_i32_0 : i32, i32
  }
  func.func @transform_6(%arg0: i32, %arg1: i32) -> (i32, i32) {
    %c0_i32 = arith.constant 0 : i32
    %c0_i32_0 = arith.constant 0 : i32
    %c0_i32_1 = arith.constant 0 : i32
    return %c0_i32, %c0_i32_0 : i32, i32
  }
  func.func @transform_7(%arg0: i32, %arg1: i32) -> (i32, i32) {
    %c0_i32 = arith.constant 0 : i32
    %c0_i32_0 = arith.constant 0 : i32
    %c0_i32_1 = arith.constant 0 : i32
    return %c0_i32, %c0_i32_0 : i32, i32
  }
  func.func @transform_8(%arg0: i32, %arg1: i32) -> (i32, i32) {
    %c0_i32 = arith.constant 0 : i32
    %c0_i32_0 = arith.constant 0 : i32
    %c0_i32_1 = arith.constant 0 : i32
    return %c0_i32, %c0_i32_0 : i32, i32
  }
  func.func @transform_9(%arg0: i32, %arg1: i32) -> (i32, i32) {
    %c0_i32 = arith.constant 0 : i32
    %c0_i32_0 = arith.constant 0 : i32
    %c0_i32_1 = arith.constant 0 : i32
    return %c0_i32, %c0_i32_0 : i32, i32
  }
  func.func @transform_10(%arg0: i32, %arg1: i32) -> (i32, i32) {
    %c0_i32 = arith.constant 0 : i32
    %c0_i32_0 = arith.constant 0 : i32
    %c0_i32_1 = arith.constant 0 : i32
    return %c0_i32, %c0_i32_0 : i32, i32
  }
  func.func @transform_11(%arg0: i32, %arg1: i32) -> (i32, i32) {
    %c0_i32 = arith.constant 0 : i32
    %c0_i32_0 = arith.constant 0 : i32
    %c0_i32_1 = arith.constant 0 : i32
    return %c0_i32, %c0_i32_0 : i32, i32
  }
  func.func @transform_12(%arg0: i32, %arg1: i32) -> (i32, i32) {
    %c0_i32 = arith.constant 0 : i32
    %c0_i32_0 = arith.constant 0 : i32
    %c0_i32_1 = arith.constant 0 : i32
    return %c0_i32, %c0_i32_0 : i32, i32
  }
  func.func @transform_13(%arg0: i32, %arg1: i32) -> (i32, i32) {
    %c0_i32 = arith.constant 0 : i32
    %c0_i32_0 = arith.constant 0 : i32
    %c0_i32_1 = arith.constant 0 : i32
    return %c0_i32, %c0_i32_0 : i32, i32
  }
  func.func @transform_14(%arg0: i32, %arg1: i32) -> (i32, i32) {
    %c0_i32 = arith.constant 0 : i32
    %c0_i32_0 = arith.constant 0 : i32
    %c0_i32_1 = arith.constant 0 : i32
    return %c0_i32, %c0_i32_0 : i32, i32
  }
  func.func @transform_15(%arg0: i32, %arg1: i32) -> (i32, i32, i32) {
    %c0_i32 = arith.constant 0 : i32
    %c0_i32_0 = arith.constant 0 : i32
    return %arg0, %arg1, %c0_i32 : i32, i32, i32
  }
}

module attributes {stable_mosaic.version = 11 : i64} {
  func.func @_kv_proj_kernel(%arg0: i32, %arg1: i32, %arg2: memref<1x8x32xf32, #tpu.memory_space<vmem>>, %arg3: memref<32x64xbf16, #tpu.memory_space<vmem>>, %arg4: memref<1x64xf32, #tpu.memory_space<vmem>>, %arg5: memref<1x8x32xbf16, #tpu.memory_space<vmem>>, %arg6: memref<1x8x32xbf16, #tpu.memory_space<vmem>>) attributes {dimension_semantics = [#tpu.dimension_semantics<parallel>, #tpu.dimension_semantics<parallel>], iteration_bounds = array<i64: 2, 1>, scalar_prefetch = 0 : i64, scratch_operands = 0 : i64, tpu.core_type = #tpu.core_type<tc>, window_params = [{transform_indices = @transform_0, window_bounds = array<i64: 1, 8, 32>}, {pipeline_mode = #tpu.pipeline_mode<synchronous>, transform_indices = @transform_1, window_bounds = array<i64: 32, 64>}, {pipeline_mode = #tpu.pipeline_mode<synchronous>, transform_indices = @transform_2, window_bounds = array<i64: 1, 64>}, {transform_indices = @transform_3, window_bounds = array<i64: 1, 8, 32>}, {transform_indices = @transform_4, window_bounds = array<i64: 1, 8, 32>}]} {
    %c0 = arith.constant 0 : index
    %c0_0 = arith.constant 0 : index
    %c0_1 = arith.constant 0 : index
    %0 = vector.load %arg2[%c0, %c0_0, %c0_1] : memref<1x8x32xf32, #tpu.memory_space<vmem>>, vector<1x8x32xf32>
    %1 = vector.shape_cast %0 : vector<1x8x32xf32> to vector<8x32xf32>
    %2 = arith.truncf %1 : vector<8x32xf32> to vector<8x32xbf16>
    %c0_2 = arith.constant 0 : index
    %c0_3 = arith.constant 0 : index
    %3 = vector.load %arg3[%c0_2, %c0_3] : memref<32x64xbf16, #tpu.memory_space<vmem>>, vector<32x64xbf16>
    %cst = arith.constant dense<0.000000e+00> : vector<8x64xf32>
    %4 = tpu.matmul %2, %3, %cst {dimension_numbers = #tpu.dot_dimension_numbers<[1], [0], [0], [1], [0, 0, 1, 1], [], []>} : vector<8x32xbf16>, vector<32x64xbf16>, vector<8x64xf32> -> vector<8x64xf32>
    %c0_4 = arith.constant 0 : index
    %c0_5 = arith.constant 0 : index
    %5 = vector.load %arg4[%c0_4, %c0_5] : memref<1x64xf32, #tpu.memory_space<vmem>>, vector<1x64xf32>
    %6 = vector.broadcast %5 : vector<1x64xf32> to vector<8x64xf32>
    %7 = arith.addf %4, %6 : vector<8x64xf32>
    %8 = vector.extract_strided_slice %7 {offsets = [0, 0], sizes = [8, 32], strides = [1, 1]} : vector<8x64xf32> to vector<8x32xf32>
    %9 = arith.truncf %8 : vector<8x32xf32> to vector<8x32xbf16>
    %c0_6 = arith.constant 0 : index
    %c0_7 = arith.constant 0 : index
    %c0_8 = arith.constant 0 : index
    %10 = vector.load %arg5[%c0_6, %c0_7, %c0_8] : memref<1x8x32xbf16, #tpu.memory_space<vmem>>, vector<1x8x32xbf16>
    %11 = vector.shape_cast %10 : vector<1x8x32xbf16> to vector<8x32xbf16>
    %12 = vector.shape_cast %9 : vector<8x32xbf16> to vector<1x8x32xbf16>
    tpu.vector_store %arg5[%c0_6, %c0_7, %c0_8], %12 {strides = array<i32>} : memref<1x8x32xbf16, #tpu.memory_space<vmem>>, vector<1x8x32xbf16>,
    %13 = vector.extract_strided_slice %7 {offsets = [0, 32], sizes = [8, 32], strides = [1, 1]} : vector<8x64xf32> to vector<8x32xf32>
    %14 = arith.truncf %13 : vector<8x32xf32> to vector<8x32xbf16>
    %c0_9 = arith.constant 0 : index
    %c0_10 = arith.constant 0 : index
    %c0_11 = arith.constant 0 : index
    %15 = vector.load %arg6[%c0_9, %c0_10, %c0_11] : memref<1x8x32xbf16, #tpu.memory_space<vmem>>, vector<1x8x32xbf16>
    %16 = vector.shape_cast %15 : vector<1x8x32xbf16> to vector<8x32xbf16>
    %17 = vector.shape_cast %14 : vector<8x32xbf16> to vector<1x8x32xbf16>
    tpu.vector_store %arg6[%c0_9, %c0_10, %c0_11], %17 {strides = array<i32>} : memref<1x8x32xbf16, #tpu.memory_space<vmem>>, vector<1x8x32xbf16>,
    return
  }
  func.func @transform_0(%arg0: i32, %arg1: i32) -> (i32, i32, i32) {
    %c0_i32 = arith.constant 0 : i32
    %c0_i32_0 = arith.constant 0 : i32
    return %arg0, %arg1, %c0_i32 : i32, i32, i32
  }
  func.func @transform_1(%arg0: i32, %arg1: i32) -> (i32, i32) {
    %c0_i32 = arith.constant 0 : i32
    %c0_i32_0 = arith.constant 0 : i32
    %c0_i32_1 = arith.constant 0 : i32
    return %c0_i32, %c0_i32_0 : i32, i32
  }
  func.func @transform_2(%arg0: i32, %arg1: i32) -> (i32, i32) {
    %c0_i32 = arith.constant 0 : i32
    %c0_i32_0 = arith.constant 0 : i32
    %c0_i32_1 = arith.constant 0 : i32
    return %c0_i32, %c0_i32_0 : i32, i32
  }
  func.func @transform_3(%arg0: i32, %arg1: i32) -> (i32, i32, i32) {
    %c0_i32 = arith.constant 0 : i32
    %c0_i32_0 = arith.constant 0 : i32
    return %arg0, %arg1, %c0_i32 : i32, i32, i32
  }
  func.func @transform_4(%arg0: i32, %arg1: i32) -> (i32, i32, i32) {
    %c0_i32 = arith.constant 0 : i32
    %c0_i32_0 = arith.constant 0 : i32
    return %arg0, %arg1, %c0_i32 : i32, i32, i32
  }
}

</mosaic_0001>

<llo_original>
// kernel: encoder_layer.2
$region0: #{encoder_layer.2}
  #allocation0 [shape = 'u32[]', space=smem, size = 0x4, offset = 0x4, fixed_abs, tag = 'smem constant byte address 0x4 - core index']
  #allocation1 [shape = 'u32[144,128]{1,0:T(1,128)}', space=vmem, size = 0x12000, scoped, tag = 'internal scratch']
  %s0 = inlined_call_operand.vmem [shape: f32[2,8,32], index: 0, kind: input, shape index: {}]
  %s1 = inlined_call_operand.hbm [shape: bf16[32,64], index: 1, kind: input, shape index: {}]
  %s2 = inlined_call_operand.vmem [shape: f32[1,64], index: 2, kind: input, shape index: {}]
  %s3 = inlined_call_operand.vmem [shape: bf16[2,8,32], index: 3, kind: output, shape index: {0}]
  %s4 = inlined_call_operand.vmem [shape: bf16[2,8,32], index: 4, kind: output, shape index: {1}]
  %5 = xla_tuple %s3, %s4
  %s6 = sld [smem:[#allocation0]]
  $region57: #{encoder_layer.2} parent=0
    _
  %s8 = ssub.s32 1, %s6
  %s9 = scalar_select 0, %s8, %s6
  $region1: #{encoder_layer.2} parent=0
    #allocation2 [shape = 'u8[8192]{0}', space=vmem, size = 0x2000, scoped, tag = 'input window, operand 1, single buffered']
    #allocation3 [shape = 's32[2]{0}', space=sflag, size = 0x8, scoped, tag = 'scoped memory for encoder_layer.2']
    %10 = vsyncpa [#allocation3], 0
    loop: start=0, step=1, limit=4
    $region2: #{encoder_layer.2} parent=1 // loop_pre_header
      _
    $region3: #{encoder_layer.2} parent=1 // loop_header
      %s12 = sphi 0, %s16
      %p13 = scmp.ge.s32.totalorder %s12, 4
      %s19 = sphi 0, %s31
      %s20 = sphi 0, %s27
      %s21 = sphi 0, %s19
      %s22 = sphi 0, %s20
      %s23 = sphi 0, %s21
      %s24 = sphi 0, %s22
      %s36 = sphi 0, %s38
      %s39 = sphi 0, %s36
      %s40 = sphi 0, %s39
      %s56 = sphi 0, %s40
      %s60 = sphi 0, %s60
      %s62 = sphi 0, %s60
      %s63 = sphi 0, %s62
      %s77 = sphi 0, %s63
      %s81 = sphi 0, %s81
      %s83 = sphi 0, %s81
      %s84 = sphi 0, %s83
      %s98 = sphi 0, %s84
      %s106 = sphi 0, %s108
      %s109 = sphi 0, %s106
      %s110 = sphi 0, %s109
      %s126 = sphi 0, %s110
      %s134 = sphi 0, %s136
      %s137 = sphi 0, %s134
      %s138 = sphi 0, %s137
      %s154 = sphi 0, %s138
    $region4: #{encoder_layer.2} parent=1 // loop_header_branch
      %15 = sbr.rel (%p13) target = $region8
    $region5: #{encoder_layer.2} parent=1 // loop_body
      %s17 = ssub.s32 %s12, 1
      %s18 = ssub.s32 %s12, 2
      %s25 = sadd.s32 1, %s20
      %p26 = scmp.ge.s32.totalorder %s25, 1
      %s27 = scalar_select %p26, 0, %s25
      %s28 = sadd.s32 1, %s19
      %s29 = scalar_select %p26, %s28, %s19
      %p30 = scmp.ge.s32.totalorder %s29, 2
      %s31 = scalar_select %p30, 0, %s29
      %s32 = ssub.s32 %s19, %s31
      %s33 = ssub.s32 %s20, %s27
      %s34 = sor.u32 %s32, %s33
      %p35 = scmp.eq.s32.totalorder %s34, 0
      %s37 = sadd.s32 %s36, 1
      %s38 = scalar_select %p35, %s36, %s37
      %p41 = pneg %p35
      %p42 = scmp.eq.s32.totalorder %s12, 1
      %p43 = por %p41, %p42
      %p44 = scmp.ne.s32.totalorder %s36, %s39
      %p45 = scmp.eq.s32.totalorder %s12, 0
      %p46 = por %p44, %p45
      %p47 = scmp.ne.s32.totalorder %s36, %s39
      %p48 = scmp.eq.s32.totalorder %s17, 1
      %p49 = por %p47, %p48
      %p50 = scmp.ne.s32.totalorder %s39, %s40
      %p51 = scmp.eq.s32.totalorder %s17, 0
      %p52 = por %p50, %p51
      %p53 = scmp.ne.s32.totalorder %s39, %s40
      %p54 = scmp.eq.s32.totalorder %s18, 1
      %p55 = por %p53, %p54
      %p57 = scmp.ne.s32.totalorder %s40, %s56
      %p58 = scmp.eq.s32.totalorder %s18, 0
      %p59 = por %p57, %p58
      %s61 = sadd.s32 %s60, 1
      %p64 = scmp.eq.s32.totalorder %s12, 1
      %p65 = scmp.ne.s32.totalorder %s60, %s62
      %p66 = scmp.eq.s32.totalorder %s12, 0
      %p67 = por %p65, %p66
      %p68 = scmp.ne.s32.totalorder %s60, %s62
      %p69 = scmp.eq.s32.totalorder %s17, 1
      %p70 = por %p68, %p69
      %p71 = scmp.ne.s32.totalorder %s62, %s63
      %p72 = scmp.eq.s32.totalorder %s17, 0
      %p73 = por %p71, %p72
      %p74 = scmp.ne.s32.totalorder %s62, %s63
      %p75 = scmp.eq.s32.totalorder %s18, 1
      %p76 = por %p74, %p75
      %p78 = scmp.ne.s32.totalorder %s63, %s77
      %p79 = scmp.eq.s32.totalorder %s18, 0
      %p80 = por %p78, %p79
      %s82 = sadd.s32 %s81, 1
      %p85 = scmp.eq.s32.totalorder %s12, 1
      %p86 = scmp.ne.s32.totalorder %s81, %s83
      %p87 = scmp.eq.s32.totalorder %s12, 0
      %p88 = por %p86, %p87
      %p89 = scmp.ne.s32.totalorder %s81, %s83
      %p90 = scmp.eq.s32.totalorder %s17, 1
      %p91 = por %p89, %p90
      %p92 = scmp.ne.s32.totalorder %s83, %s84
      %p93 = scmp.eq.s32.totalorder %s17, 0
      %p94 = por %p92, %p93
      %p95 = scmp.ne.s32.totalorder %s83, %s84
      %p96 = scmp.eq.s32.totalorder %s18, 1
      %p97 = por %p95, %p96
      %p99 = scmp.ne.s32.totalorder %s84, %s98
      %p100 = scmp.eq.s32.totalorder %s18, 0
      %p101 = por %p99, %p100
      %s102 = ssub.s32 %s19, %s31
      %s103 = ssub.s32 %s20, %s27
      %s104 = sor.u32 %s102, %s103
      %p105 = scmp.eq.s32.totalorder %s104, 0
      %s107 = sadd.s32 %s106, 1
      %s108 = scalar_select %p105, %s106, %s107
      %p111 = pneg %p105
      %p112 = scmp.eq.s32.totalorder %s12, 1
      %p113 = por %p111, %p112
      %p114 = scmp.ne.s32.totalorder %s106, %s109
      %p115 = scmp.eq.s32.totalorder %s12, 0
      %p116 = por %p114, %p115
      %p117 = scmp.ne.s32.totalorder %s106, %s109
      %p118 = scmp.eq.s32.totalorder %s17, 1
      %p119 = por %p117, %p118
      %p120 = scmp.ne.s32.totalorder %s109, %s110
      %p121 = scmp.eq.s32.totalorder %s17, 0
      %p122 = por %p120, %p121
      %p123 = scmp.ne.s32.totalorder %s109, %s110
      %p124 = scmp.eq.s32.totalorder %s18, 1
      %p125 = por %p123, %p124
      %p127 = scmp.ne.s32.totalorder %s110, %s126
      %p128 = scmp.eq.s32.totalorder %s18, 0
      %p129 = por %p127, %p128
      %s130 = ssub.s32 %s19, %s31
      %s131 = ssub.s32 %s20, %s27
      %s132 = sor.u32 %s130, %s131
      %p133 = scmp.eq.s32.totalorder %s132, 0
      %s135 = sadd.s32 %s134, 1
      %s136 = scalar_select %p133, %s134, %s135
      %p139 = pneg %p133
      %p140 = scmp.eq.s32.totalorder %s12, 1
      %p141 = por %p139, %p140
      %p142 = scmp.ne.s32.totalorder %s134, %s137
      %p143 = scmp.eq.s32.totalorder %s12, 0
      %p144 = por %p142, %p143
      %p145 = scmp.ne.s32.totalorder %s134, %s137
      %p146 = scmp.eq.s32.totalorder %s17, 1
      %p147 = por %p145, %p146
      %p148 = scmp.ne.s32.totalorder %s137, %s138
      %p149 = scmp.eq.s32.totalorder %s17, 0
      %p150 = por %p148, %p149
      %p151 = scmp.ne.s32.totalorder %s137, %s138
      %p152 = scmp.eq.s32.totalorder %s18, 1
      %p153 = por %p151, %p152
      %p155 = scmp.ne.s32.totalorder %s138, %s154
      %p156 = scmp.eq.s32.totalorder %s18, 0
      %p157 = por %p155, %p156
      %p158 = scmp.le.s32.totalorder 1, %s12
      %p159 = scmp.lt.s32.totalorder %s12, 3
      %p160 = pnand %p158, %p159
      %p161 = pneg %p160
      // Predicated region
      $region9: #{encoder_layer.2} parent=5 // pred_check
        _
      $region10: #{encoder_layer.2} parent=5 // pred_check_branch
        %163 = sbr.rel (%p160) target = $region12
      $region11: #{encoder_layer.2} parent=5 // pred_region
        %s164 = ssub.s32 %s12, 1
        // Predicated region
        $region13: #{encoder_layer.2} parent=11 // pred_check
          %p165 = pneg %p73
        $region14: #{encoder_layer.2} parent=11 // pred_check_branch
          %167 = sbr.rel (%p165) target = $region16
        $region15: #{encoder_layer.2} parent=11 // pred_region
          %s169 = ssub.s32 256, 256
          %170 = vsyncadd [#allocation3], %s169
          %s171 = sshll.u32 [#allocation2], 4
          %s172 = int_to_ptr.vmem [resolvable:$true] %s171
          %177 = dma.hbm_to_vmem [thread:$0]  %s1, 256, %s172, [#allocation3], 64, 64, 4
        $region16: #{encoder_layer.2} parent=11 // pred_fallthru
          _
        // Predicated region
        $region17: #{encoder_layer.2} parent=11 // pred_check
          %p178 = pneg %p94
        $region18: #{encoder_layer.2} parent=11 // pred_check_branch
          %180 = sbr.rel (%p178) target = $region20
        $region19: #{encoder_layer.2} parent=11 // pred_region
          _
        $region20: #{encoder_layer.2} parent=11 // pred_fallthru
          _
      $region12: #{encoder_layer.2} parent=5 // pred_fallthru
        _
      %p181 = scmp.lt.s32.totalorder %s12, 2
      // Predicated region
      $region21: #{encoder_layer.2} parent=5 // pred_check
        %p182 = pneg %p181
      $region22: #{encoder_layer.2} parent=5 // pred_check_branch
        %184 = sbr.rel (%p182) target = $region24
      $region23: #{encoder_layer.2} parent=5 // pred_region
        // Predicated region
        $region25: #{encoder_layer.2} parent=23 // pred_check
          %p185 = pneg %p46
        $region26: #{encoder_layer.2} parent=23 // pred_check_branch
          %187 = sbr.rel (%p185) target = $region28
        $region27: #{encoder_layer.2} parent=23 // pred_region
          %p188 = scmp.lt.s32.totalorder %s19, 1
          %s189 = scalar_select %p188, %s19, 1
          %p190 = scmp.lt.s32.totalorder %s20, 0
          %s191 = scalar_select %p190, %s20, 0
          %s192 = sadd.s32 %s191, %s189
          %s193 = smul.addr %s192, 8
          %s194 = scalar_lea.vmem %s0, %s193
        $region28: #{encoder_layer.2} parent=23 // pred_fallthru
          _
      $region24: #{encoder_layer.2} parent=5 // pred_fallthru
        _
      %p195 = scmp.le.s32.totalorder 1, %s12
      %p196 = scmp.lt.s32.totalorder %s12, 3
      %p197 = pnand %p195, %p196
      %p198 = pneg %p197
      // Predicated region
      $region29: #{encoder_layer.2} parent=5 // pred_check
        _
      $region30: #{encoder_layer.2} parent=5 // pred_check_branch
        %200 = sbr.rel (%p197) target = $region32
      $region31: #{encoder_layer.2} parent=5 // pred_region
        %s201 = ssub.s32 %s12, 1
        // Predicated region
        $region33: #{encoder_layer.2} parent=31 // pred_check
          %p202 = pneg %p73
        $region34: #{encoder_layer.2} parent=31 // pred_check_branch
          %204 = sbr.rel (%p202) target = $region36
        $region35: #{encoder_layer.2} parent=31 // pred_region
          %205 = dma.done [#allocation3], 256
        $region36: #{encoder_layer.2} parent=31 // pred_fallthru
          _
        %p206 = scmp.lt.s32.totalorder %s21, 1
        %s207 = scalar_select %p206, %s21, 1
        %p208 = scmp.lt.s32.totalorder %s22, 0
        %s209 = scalar_select %p208, %s22, 0
        %s210 = sadd.s32 %s209, %s207
        %s211 = smul.addr %s210, 8
        %s212 = scalar_lea.vmem %s0, %s211
        %p213 = pneg %p52
        %p214 = pneg %p49
        %p215 = pneg %p73
        %p216 = pneg %p70
        %p217 = pneg %p94
        %p218 = pneg %p91
        %p219 = pneg %p122
        %p220 = pneg %p119
        %p221 = scmp.lt.s32.totalorder %s21, 1
        %s222 = scalar_select %p221, %s21, 1
        %p223 = scmp.lt.s32.totalorder %s22, 0
        %s224 = scalar_select %p223, %s22, 0
        %s225 = sadd.s32 %s224, %s222
        %s226 = smul.addr %s225, 4
        %s227 = scalar_lea.vmem %s3, %s226
        %p228 = pneg %p150
        %p229 = pneg %p147
        %p230 = scmp.lt.s32.totalorder %s21, 1
        %s231 = scalar_select %p230, %s21, 1
        %p232 = scmp.lt.s32.totalorder %s22, 0
        %s233 = scalar_select %p232, %s22, 0
        %s234 = sadd.s32 %s233, %s231
        %s235 = smul.addr %s234, 4
        %s236 = scalar_lea.vmem %s4, %s235
        %p237 = scmp.lt.s32.totalorder %s21, 1
        %s238 = scalar_select %p237, %s21, 1
        %p239 = scmp.lt.s32.totalorder %s22, 0
        %s240 = scalar_select %p239, %s22, 0
        %s241 = sadd.s32 %s240, %s238
        %s242 = smul.addr %s241, 8
        %s243 = scalar_lea.vmem %s0, %s242
        %p244 = scmp.lt.s32.totalorder %s21, 1
        %s245 = scalar_select %p244, %s21, 1
        %p246 = scmp.lt.s32.totalorder %s22, 0
        %s247 = scalar_select %p246, %s22, 0
        %s248 = sadd.s32 %s247, %s245
        %s249 = smul.addr %s248, 4
        %s250 = scalar_lea.vmem %s3, %s249
        %p251 = scmp.lt.s32.totalorder %s21, 1
        %s252 = scalar_select %p251, %s21, 1
        %p253 = scmp.lt.s32.totalorder %s22, 0
        %s254 = scalar_select %p253, %s22, 0
        %s255 = sadd.s32 %s254, %s252
        %s256 = smul.addr %s255, 4
        %s257 = scalar_lea.vmem %s4, %s256
        %v259 = vld [vmem:[%s243] sm:$0xff]
        %v260 = vpack.c.bf16 %v259, %v259
        %v261 = vld [vmem:[#allocation2] sm:$0xf]
        %v262 = vld [vmem:[#allocation2 + $0x4] sm:$0xf]
        %v263 = vld [vmem:[#allocation2 + $0x8] sm:$0xf]
        %v264 = vld [vmem:[#allocation2 + $0xc] sm:$0xf]
        %v265 = vld [vmem:[%s2] sm:$0x1]
        %v267 = vlaneseq
        %v268 = vshrl.u32 %v267, 7
        %v269 = vsub.s32 0, %v268
        %v270 = vrot.slane %v265, %v269
        %v276 = vunpack.c.l.b16 %v261
        %v277 = vunpack.c.l.b16 %v262
        %v278 = vunpack.c.l.b16 %v263
        %v279 = vunpack.c.l.b16 %v264
        %v280 = vpack.c.b16 %v277, %v276
        %v281 = vpack.c.b16 %v279, %v278
        %vm284 = vcmask 261120
        %v286 = vsel %vm284, %v260, 0
        %288 = vmatprep.subr.bf16.mxu0 0
        %289 = vmatpush1.bf16.msra.mxu0 0
        %290 = vmatprep.subr.bf16.mxu0 0
        %291 = vmatpush1.bf16.msra.mxu0 0
        %292 = vmatprep.subr.bf16.mxu0 0
        %293 = vmatpush1.bf16.msra.mxu0 0
        %294 = vmatprep.subr.bf16.mxu0 0
        %295 = vmatpush1.bf16.msra.mxu0 0
        %296 = vmatprep.subr.bf16.mxu0 0
        %297 = vmatpush1.bf16.msra.mxu0 0
        %298 = vmatprep.subr.bf16.mxu0 0
        %299 = vmatpush1.bf16.msra.mxu0 0
        %300 = vmatprep.subr.bf16.mxu0 0
        %301 = vmatpush1.bf16.msra.mxu0 %v281
        %302 = vmatprep.subr.bf16.mxu0 0
        %303 = vmatpush1.bf16.msra.mxu0 %v280
        %304 = vmatprep.subr.bf16.mxu0 0
        %305 = vmatpush2.bf16.msra.mxu0 0
        %306 = vmatprep.subr.bf16.mxu0 0
        %307 = vmatpush2.bf16.msra.mxu0 0
        %308 = vmatprep.subr.bf16.mxu0 0
        %309 = vmatpush2.bf16.msra.mxu0 0
        %310 = vmatprep.subr.bf16.mxu0 0
        %311 = vmatpush2.bf16.msra.mxu0 0
        %312 = vmatprep.subr.bf16.mxu0 0
        %313 = vmatpush2.bf16.msra.mxu0 0
        %314 = vmatprep.subr.bf16.mxu0 0
        %315 = vmatpush2.bf16.msra.mxu0 0
        %316 = vmatprep.subr.bf16.mxu0 0
        %317 = vmatpush2.bf16.msra.mxu0 0
        %318 = vmatprep.subr.bf16.mxu0 0
        %319 = vmatpush2.bf16.msra.mxu0 0
        %320 = vmatprep.mubr.bf16.mxu0 0
        %321 = vmatmul.mubr.bf16.gmra.mxu0 %v286
        %v322 = vpop.f32.mrf.mxu0
        %v323 = vadd.f32 %v270, %v322
        %v324 = vpop.f32.mrf.mxu0
        %v325 = vpop.f32.mrf.mxu0
        %v326 = vpop.f32.mrf.mxu0
        %327 = vdwg.mxu0
        %v328 = vpack.c.bf16 %v323, %v323
        %vm329 = vcmask 257024
        %330 = vst.msk [vmem:[%s250] sm:$0xf] %vm329, %v328
        %v332 = vunpack.c.l.b16 %v328
        %v333 = vpack.c.b16 %v332, %v332
        %334 = vrot.lane.b32.xlu0 %v333, 96
        %v335 = vpop.permute.xlu0 %334
        %337 = vst.msk [vmem:[%s257] sm:$0xf] %vm329, %v335
        %p338 = scmp.lt.s32.totalorder %s21, 1
        %s339 = scalar_select %p338, %s21, 1
        %p340 = scmp.lt.s32.totalorder %s22, 0
        %s341 = scalar_select %p340, %s22, 0
        %s342 = sadd.s32 %s341, %s339
        %s343 = smul.addr %s342, 4
        %s344 = scalar_lea.vmem %s3, %s343
        %p345 = scmp.lt.s32.totalorder %s21, 1
        %s346 = scalar_select %p345, %s21, 1
        %p347 = scmp.lt.s32.totalorder %s22, 0
        %s348 = scalar_select %p347, %s22, 0
        %s349 = sadd.s32 %s348, %s346
        %s350 = smul.addr %s349, 4
        %s351 = scalar_lea.vmem %s4, %s350
        // Predicated region
        $region37: #{encoder_layer.2} parent=31 // pred_check
          %p352 = pneg %p119
        $region38: #{encoder_layer.2} parent=31 // pred_check_branch
          %354 = sbr.rel (%p352) target = $region40
        $region39: #{encoder_layer.2} parent=31 // pred_region
          _
        $region40: #{encoder_layer.2} parent=31 // pred_fallthru
          _
        // Predicated region
        $region41: #{encoder_layer.2} parent=31 // pred_check
          %p355 = pneg %p147
        $region42: #{encoder_layer.2} parent=31 // pred_check_branch
          %357 = sbr.rel (%p355) target = $region44
        $region43: #{encoder_layer.2} parent=31 // pred_region
          _
        $region44: #{encoder_layer.2} parent=31 // pred_fallthru
          _
      $region32: #{encoder_layer.2} parent=5 // pred_fallthru
        _
      %p358 = scmp.le.s32.totalorder 2, %s12
      // Predicated region
      $region45: #{encoder_layer.2} parent=5 // pred_check
        %p359 = pneg %p358
      $region46: #{encoder_layer.2} parent=5 // pred_check_branch
        %361 = sbr.rel (%p359) target = $region48
      $region47: #{encoder_layer.2} parent=5 // pred_region
        %s362 = ssub.s32 %s12, 2
        // Predicated region
        $region49: #{encoder_layer.2} parent=47 // pred_check
          %p363 = pneg %p125
        $region50: #{encoder_layer.2} parent=47 // pred_check_branch
          %365 = sbr.rel (%p363) target = $region52
        $region51: #{encoder_layer.2} parent=47 // pred_region
          %p366 = scmp.lt.s32.totalorder %s23, 1
          %s367 = scalar_select %p366, %s23, 1
          %p368 = scmp.lt.s32.totalorder %s24, 0
          %s369 = scalar_select %p368, %s24, 0
          %s370 = sadd.s32 %s369, %s367
          %s371 = smul.addr %s370, 4
          %s372 = scalar_lea.vmem %s3, %s371
        $region52: #{encoder_layer.2} parent=47 // pred_fallthru
          _
        // Predicated region
        $region53: #{encoder_layer.2} parent=47 // pred_check
          %p373 = pneg %p153
        $region54: #{encoder_layer.2} parent=47 // pred_check_branch
          %375 = sbr.rel (%p373) target = $region56
        $region55: #{encoder_layer.2} parent=47 // pred_region
          %p376 = scmp.lt.s32.totalorder %s23, 1
          %s377 = scalar_select %p376, %s23, 1
          %p378 = scmp.lt.s32.totalorder %s24, 0
          %s379 = scalar_select %p378, %s24, 0
          %s380 = sadd.s32 %s379, %s377
          %s381 = smul.addr %s380, 4
          %s382 = scalar_lea.vmem %s4, %s381
        $region56: #{encoder_layer.2} parent=47 // pred_fallthru
          _
      $region48: #{encoder_layer.2} parent=5 // pred_fallthru
        _
    $region6: #{encoder_layer.2} parent=1 // loop_footer
      %s16 = sadd.s32 1, %s12
    $region7: #{encoder_layer.2} parent=1 // loop_footer_branch
      %11 = sbr.rel target = $region3
    $region8: #{encoder_layer.2} parent=1 // loop_exit
      _
    %383 = vsyncpa [#allocation3], 1
    %s384 = scalar_lea.sflag [#allocation3], 1
    %385 = vsyncpa %s384, 1

// kernel: encoder_layer.3
$region0: #{encoder_layer.3}
  #allocation0 [shape = 'u32[]', space=smem, size = 0x4, offset = 0x4, fixed_abs, tag = 'smem constant byte address 0x4 - core index']
  #allocation1 [shape = 'u32[144,128]{1,0:T(1,128)}', space=vmem, size = 0x12000, scoped, tag = 'internal scratch']
  #allocation2 [shape = 'f32[8,32]{1,0:T(8,128)}', space=vmem, size = 0x1000, scoped, tag = 'scratch operand']
  %s0 = inlined_call_operand.vmem [shape: f32[2,8,32], index: 0, kind: input, shape index: {}]
  %s1 = inlined_call_operand.vmem [shape: bf16[2,8,32], index: 1, kind: input, shape index: {}]
  %s2 = inlined_call_operand.vmem [shape: bf16[2,8,32], index: 2, kind: input, shape index: {}]
  %s3 = inlined_call_operand.vmem [shape: bf16[32,32], index: 3, kind: input, shape index: {}]
  %s4 = inlined_call_operand.vmem [shape: f32[1,32], index: 4, kind: input, shape index: {}]
  %s5 = inlined_call_operand.vmem [shape: bf16[32,32], index: 5, kind: input, shape index: {}]
  %s6 = inlined_call_operand.vmem [shape: f32[1,32], index: 6, kind: input, shape index: {}]
  %s7 = inlined_call_operand.vmem [shape: f32[1,32], index: 7, kind: input, shape index: {}]
  %s8 = inlined_call_operand.vmem [shape: f32[1,32], index: 8, kind: input, shape index: {}]
  %s9 = inlined_call_operand.vmem [shape: bf16[32,64], index: 9, kind: input, shape index: {}]
  %s10 = inlined_call_operand.vmem [shape: f32[1,64], index: 10, kind: input, shape index: {}]
  %s11 = inlined_call_operand.vmem [shape: bf16[64,32], index: 11, kind: input, shape index: {}]
  %s12 = inlined_call_operand.vmem [shape: f32[1,32], index: 12, kind: input, shape index: {}]
  %s13 = inlined_call_operand.vmem [shape: f32[1,32], index: 13, kind: input, shape index: {}]
  %s14 = inlined_call_operand.vmem [shape: f32[1,32], index: 14, kind: input, shape index: {}]
  %s15 = inlined_call_operand.hbm [shape: f32[2,8,32], index: 15, kind: output, shape index: {}]
  %s16 = sld [smem:[#allocation0]]
  $region93: #{encoder_layer.3} parent=0
    _
  %s18 = ssub.s32 1, %s16
  %s19 = scalar_select 0, %s18, %s16
  $region1: #{encoder_layer.3} parent=0
    #allocation3 [shape = 'u8[8192]{0}', space=vmem, size = 0x2000, scoped, tag = 'output window, operand 0']
    #allocation4 [shape = 's32[2]{0}', space=sflag, size = 0x8, scoped, tag = 'scoped memory for encoder_layer.3']
    %20 = vsyncpa [#allocation4], 0
    %s21 = scalar_lea.sflag [#allocation4], 1
    %22 = vsyncpa %s21, 0
    loop: start=0, step=1, limit=4
    $region2: #{encoder_layer.3} parent=1 // loop_pre_header
      _
    $region3: #{encoder_layer.3} parent=1 // loop_header
      %s24 = sphi 0, %s28
      %p25 = scmp.ge.s32.totalorder %s24, 4
      %s31 = sphi 0, %s43
      %s32 = sphi 0, %s39
      %s33 = sphi 0, %s31
      %s34 = sphi 0, %s32
      %s35 = sphi 0, %s33
      %s36 = sphi 0, %s34
      %s48 = sphi 0, %s50
      %s51 = sphi 0, %s48
      %s52 = sphi 0, %s51
      %s68 = sphi 0, %s52
      %s74 = sphi 0, %s76
      %s77 = sphi 0, %s74
      %s78 = sphi 0, %s77
      %s94 = sphi 0, %s78
      %s100 = sphi 0, %s102
      %s103 = sphi 0, %s100
      %s104 = sphi 0, %s103
      %s120 = sphi 0, %s104
      %s124 = sphi 0, %s124
      %s126 = sphi 0, %s124
      %s127 = sphi 0, %s126
      %s141 = sphi 0, %s127
      %s145 = sphi 0, %s145
      %s147 = sphi 0, %s145
      %s148 = sphi 0, %s147
      %s162 = sphi 0, %s148
      %s166 = sphi 0, %s166
      %s168 = sphi 0, %s166
      %s169 = sphi 0, %s168
      %s183 = sphi 0, %s169
      %s187 = sphi 0, %s187
      %s189 = sphi 0, %s187
      %s190 = sphi 0, %s189
      %s204 = sphi 0, %s190
      %s208 = sphi 0, %s208
      %s210 = sphi 0, %s208
      %s211 = sphi 0, %s210
      %s225 = sphi 0, %s211
      %s229 = sphi 0, %s229
      %s231 = sphi 0, %s229
      %s232 = sphi 0, %s231
      %s246 = sphi 0, %s232
      %s250 = sphi 0, %s250
      %s252 = sphi 0, %s250
      %s253 = sphi 0, %s252
      %s267 = sphi 0, %s253
      %s271 = sphi 0, %s271
      %s273 = sphi 0, %s271
      %s274 = sphi 0, %s273
      %s288 = sphi 0, %s274
      %s292 = sphi 0, %s292
      %s294 = sphi 0, %s292
      %s295 = sphi 0, %s294
      %s309 = sphi 0, %s295
      %s313 = sphi 0, %s313
      %s315 = sphi 0, %s313
      %s316 = sphi 0, %s315
      %s330 = sphi 0, %s316
      %s334 = sphi 0, %s334
      %s336 = sphi 0, %s334
      %s337 = sphi 0, %s336
      %s351 = sphi 0, %s337
      %s355 = sphi 0, %s355
      %s357 = sphi 0, %s355
      %s358 = sphi 0, %s357
      %s372 = sphi 0, %s358
      %s380 = sphi 0, %s382
      %s383 = sphi 0, %s380
      %s384 = sphi 0, %s383
      %s400 = sphi 0, %s384
    $region4: #{encoder_layer.3} parent=1 // loop_header_branch
      %27 = sbr.rel (%p25) target = $region8
    $region5: #{encoder_layer.3} parent=1 // loop_body
      %s29 = ssub.s32 %s24, 1
      %s30 = ssub.s32 %s24, 2
      %s37 = sadd.s32 1, %s32
      %p38 = scmp.ge.s32.totalorder %s37, 1
      %s39 = scalar_select %p38, 0, %s37
      %s40 = sadd.s32 1, %s31
      %s41 = scalar_select %p38, %s40, %s31
      %p42 = scmp.ge.s32.totalorder %s41, 2
      %s43 = scalar_select %p42, 0, %s41
      %s44 = ssub.s32 %s31, %s43
      %s45 = ssub.s32 %s32, %s39
      %s46 = sor.u32 %s44, %s45
      %p47 = scmp.eq.s32.totalorder %s46, 0
      %s49 = sadd.s32 %s48, 1
      %s50 = scalar_select %p47, %s48, %s49
      %p53 = pneg %p47
      %p54 = scmp.eq.s32.totalorder %s24, 1
      %p55 = por %p53, %p54
      %p56 = scmp.ne.s32.totalorder %s48, %s51
      %p57 = scmp.eq.s32.totalorder %s24, 0
      %p58 = por %p56, %p57
      %p59 = scmp.ne.s32.totalorder %s48, %s51
      %p60 = scmp.eq.s32.totalorder %s29, 1
      %p61 = por %p59, %p60
      %p62 = scmp.ne.s32.totalorder %s51, %s52
      %p63 = scmp.eq.s32.totalorder %s29, 0
      %p64 = por %p62, %p63
      %p65 = scmp.ne.s32.totalorder %s51, %s52
      %p66 = scmp.eq.s32.totalorder %s30, 1
      %p67 = por %p65, %p66
      %p69 = scmp.ne.s32.totalorder %s52, %s68
      %p70 = scmp.eq.s32.totalorder %s30, 0
      %p71 = por %p69, %p70
      %s72 = ssub.s32 %s31, %s43
      %p73 = scmp.eq.s32.totalorder %s72, 0
      %s75 = sadd.s32 %s74, 1
      %s76 = scalar_select %p73, %s74, %s75
      %p79 = pneg %p73
      %p80 = scmp.eq.s32.totalorder %s24, 1
      %p81 = por %p79, %p80
      %p82 = scmp.ne.s32.totalorder %s74, %s77
      %p83 = scmp.eq.s32.totalorder %s24, 0
      %p84 = por %p82, %p83
      %p85 = scmp.ne.s32.totalorder %s74, %s77
      %p86 = scmp.eq.s32.totalorder %s29, 1
      %p87 = por %p85, %p86
      %p88 = scmp.ne.s32.totalorder %s77, %s78
      %p89 = scmp.eq.s32.totalorder %s29, 0
      %p90 = por %p88, %p89
      %p91 = scmp.ne.s32.totalorder %s77, %s78
      %p92 = scmp.eq.s32.totalorder %s30, 1
      %p93 = por %p91, %p92
      %p95 = scmp.ne.s32.totalorder %s78, %s94
      %p96 = scmp.eq.s32.totalorder %s30, 0
      %p97 = por %p95, %p96
      %s98 = ssub.s32 %s31, %s43
      %p99 = scmp.eq.s32.totalorder %s98, 0
      %s101 = sadd.s32 %s100, 1
      %s102 = scalar_select %p99, %s100, %s101
      %p105 = pneg %p99
      %p106 = scmp.eq.s32.totalorder %s24, 1
      %p107 = por %p105, %p106
      %p108 = scmp.ne.s32.totalorder %s100, %s103
      %p109 = scmp.eq.s32.totalorder %s24, 0
      %p110 = por %p108, %p109
      %p111 = scmp.ne.s32.totalorder %s100, %s103
      %p112 = scmp.eq.s32.totalorder %s29, 1
      %p113 = por %p111, %p112
      %p114 = scmp.ne.s32.totalorder %s103, %s104
      %p115 = scmp.eq.s32.totalorder %s29, 0
      %p116 = por %p114, %p115
      %p117 = scmp.ne.s32.totalorder %s103, %s104
      %p118 = scmp.eq.s32.totalorder %s30, 1
      %p119 = por %p117, %p118
      %p121 = scmp.ne.s32.totalorder %s104, %s120
      %p122 = scmp.eq.s32.totalorder %s30, 0
      %p123 = por %p121, %p122
      %s125 = sadd.s32 %s124, 1
      %p128 = scmp.eq.s32.totalorder %s24, 1
      %p129 = scmp.ne.s32.totalorder %s124, %s126
      %p130 = scmp.eq.s32.totalorder %s24, 0
      %p131 = por %p129, %p130
      %p132 = scmp.ne.s32.totalorder %s124, %s126
      %p133 = scmp.eq.s32.totalorder %s29, 1
      %p134 = por %p132, %p133
      %p135 = scmp.ne.s32.totalorder %s126, %s127
      %p136 = scmp.eq.s32.totalorder %s29, 0
      %p137 = por %p135, %p136
      %p138 = scmp.ne.s32.totalorder %s126, %s127
      %p139 = scmp.eq.s32.totalorder %s30, 1
      %p140 = por %p138, %p139
      %p142 = scmp.ne.s32.totalorder %s127, %s141
      %p143 = scmp.eq.s32.totalorder %s30, 0
      %p144 = por %p142, %p143
      %s146 = sadd.s32 %s145, 1
      %p149 = scmp.eq.s32.totalorder %s24, 1
      %p150 = scmp.ne.s32.totalorder %s145, %s147
      %p151 = scmp.eq.s32.totalorder %s24, 0
      %p152 = por %p150, %p151
      %p153 = scmp.ne.s32.totalorder %s145, %s147
      %p154 = scmp.eq.s32.totalorder %s29, 1
      %p155 = por %p153, %p154
      %p156 = scmp.ne.s32.totalorder %s147, %s148
      %p157 = scmp.eq.s32.totalorder %s29, 0
      %p158 = por %p156, %p157
      %p159 = scmp.ne.s32.totalorder %s147, %s148
      %p160 = scmp.eq.s32.totalorder %s30, 1
      %p161 = por %p159, %p160
      %p163 = scmp.ne.s32.totalorder %s148, %s162
      %p164 = scmp.eq.s32.totalorder %s30, 0
      %p165 = por %p163, %p164
      %s167 = sadd.s32 %s166, 1
      %p170 = scmp.eq.s32.totalorder %s24, 1
      %p171 = scmp.ne.s32.totalorder %s166, %s168
      %p172 = scmp.eq.s32.totalorder %s24, 0
      %p173 = por %p171, %p172
      %p174 = scmp.ne.s32.totalorder %s166, %s168
      %p175 = scmp.eq.s32.totalorder %s29, 1
      %p176 = por %p174, %p175
      %p177 = scmp.ne.s32.totalorder %s168, %s169
      %p178 = scmp.eq.s32.totalorder %s29, 0
      %p179 = por %p177, %p178
      %p180 = scmp.ne.s32.totalorder %s168, %s169
      %p181 = scmp.eq.s32.totalorder %s30, 1
      %p182 = por %p180, %p181
      %p184 = scmp.ne.s32.totalorder %s169, %s183
      %p185 = scmp.eq.s32.totalorder %s30, 0
      %p186 = por %p184, %p185
      %s188 = sadd.s32 %s187, 1
      %p191 = scmp.eq.s32.totalorder %s24, 1
      %p192 = scmp.ne.s32.totalorder %s187, %s189
      %p193 = scmp.eq.s32.totalorder %s24, 0
      %p194 = por %p192, %p193
      %p195 = scmp.ne.s32.totalorder %s187, %s189
      %p196 = scmp.eq.s32.totalorder %s29, 1
      %p197 = por %p195, %p196
      %p198 = scmp.ne.s32.totalorder %s189, %s190
      %p199 = scmp.eq.s32.totalorder %s29, 0
      %p200 = por %p198, %p199
      %p201 = scmp.ne.s32.totalorder %s189, %s190
      %p202 = scmp.eq.s32.totalorder %s30, 1
      %p203 = por %p201, %p202
      %p205 = scmp.ne.s32.totalorder %s190, %s204
      %p206 = scmp.eq.s32.totalorder %s30, 0
      %p207 = por %p205, %p206
      %s209 = sadd.s32 %s208, 1
      %p212 = scmp.eq.s32.totalorder %s24, 1
      %p213 = scmp.ne.s32.totalorder %s208, %s210
      %p214 = scmp.eq.s32.totalorder %s24, 0
      %p215 = por %p213, %p214
      %p216 = scmp.ne.s32.totalorder %s208, %s210
      %p217 = scmp.eq.s32.totalorder %s29, 1
      %p218 = por %p216, %p217
      %p219 = scmp.ne.s32.totalorder %s210, %s211
      %p220 = scmp.eq.s32.totalorder %s29, 0
      %p221 = por %p219, %p220
      %p222 = scmp.ne.s32.totalorder %s210, %s211
      %p223 = scmp.eq.s32.totalorder %s30, 1
      %p224 = por %p222, %p223
      %p226 = scmp.ne.s32.totalorder %s211, %s225
      %p227 = scmp.eq.s32.totalorder %s30, 0
      %p228 = por %p226, %p227
      %s230 = sadd.s32 %s229, 1
      %p233 = scmp.eq.s32.totalorder %s24, 1
      %p234 = scmp.ne.s32.totalorder %s229, %s231
      %p235 = scmp.eq.s32.totalorder %s24, 0
      %p236 = por %p234, %p235
      %p237 = scmp.ne.s32.totalorder %s229, %s231
      %p238 = scmp.eq.s32.totalorder %s29, 1
      %p239 = por %p237, %p238
      %p240 = scmp.ne.s32.totalorder %s231, %s232
      %p241 = scmp.eq.s32.totalorder %s29, 0
      %p242 = por %p240, %p241
      %p243 = scmp.ne.s32.totalorder %s231, %s232
      %p244 = scmp.eq.s32.totalorder %s30, 1
      %p245 = por %p243, %p244
      %p247 = scmp.ne.s32.totalorder %s232, %s246
      %p248 = scmp.eq.s32.totalorder %s30, 0
      %p249 = por %p247, %p248
      %s251 = sadd.s32 %s250, 1
      %p254 = scmp.eq.s32.totalorder %s24, 1
      %p255 = scmp.ne.s32.totalorder %s250, %s252
      %p256 = scmp.eq.s32.totalorder %s24, 0
      %p257 = por %p255, %p256
      %p258 = scmp.ne.s32.totalorder %s250, %s252
      %p259 = scmp.eq.s32.totalorder %s29, 1
      %p260 = por %p258, %p259
      %p261 = scmp.ne.s32.totalorder %s252, %s253
      %p262 = scmp.eq.s32.totalorder %s29, 0
      %p263 = por %p261, %p262
      %p264 = scmp.ne.s32.totalorder %s252, %s253
      %p265 = scmp.eq.s32.totalorder %s30, 1
      %p266 = por %p264, %p265
      %p268 = scmp.ne.s32.totalorder %s253, %s267
      %p269 = scmp.eq.s32.totalorder %s30, 0
      %p270 = por %p268, %p269
      %s272 = sadd.s32 %s271, 1
      %p275 = scmp.eq.s32.totalorder %s24, 1
      %p276 = scmp.ne.s32.totalorder %s271, %s273
      %p277 = scmp.eq.s32.totalorder %s24, 0
      %p278 = por %p276, %p277
      %p279 = scmp.ne.s32.totalorder %s271, %s273
      %p280 = scmp.eq.s32.totalorder %s29, 1
      %p281 = por %p279, %p280
      %p282 = scmp.ne.s32.totalorder %s273, %s274
      %p283 = scmp.eq.s32.totalorder %s29, 0
      %p284 = por %p282, %p283
      %p285 = scmp.ne.s32.totalorder %s273, %s274
      %p286 = scmp.eq.s32.totalorder %s30, 1
      %p287 = por %p285, %p286
      %p289 = scmp.ne.s32.totalorder %s274, %s288
      %p290 = scmp.eq.s32.totalorder %s30, 0
      %p291 = por %p289, %p290
      %s293 = sadd.s32 %s292, 1
      %p296 = scmp.eq.s32.totalorder %s24, 1
      %p297 = scmp.ne.s32.totalorder %s292, %s294
      %p298 = scmp.eq.s32.totalorder %s24, 0
      %p299 = por %p297, %p298
      %p300 = scmp.ne.s32.totalorder %s292, %s294
      %p301 = scmp.eq.s32.totalorder %s29, 1
      %p302 = por %p300, %p301
      %p303 = scmp.ne.s32.totalorder %s294, %s295
      %p304 = scmp.eq.s32.totalorder %s29, 0
      %p305 = por %p303, %p304
      %p306 = scmp.ne.s32.totalorder %s294, %s295
      %p307 = scmp.eq.s32.totalorder %s30, 1
      %p308 = por %p306, %p307
      %p310 = scmp.ne.s32.totalorder %s295, %s309
      %p311 = scmp.eq.s32.totalorder %s30, 0
      %p312 = por %p310, %p311
      %s314 = sadd.s32 %s313, 1
      %p317 = scmp.eq.s32.totalorder %s24, 1
      %p318 = scmp.ne.s32.totalorder %s313, %s315
      %p319 = scmp.eq.s32.totalorder %s24, 0
      %p320 = por %p318, %p319
      %p321 = scmp.ne.s32.totalorder %s313, %s315
      %p322 = scmp.eq.s32.totalorder %s29, 1
      %p323 = por %p321, %p322
      %p324 = scmp.ne.s32.totalorder %s315, %s316
      %p325 = scmp.eq.s32.totalorder %s29, 0
      %p326 = por %p324, %p325
      %p327 = scmp.ne.s32.totalorder %s315, %s316
      %p328 = scmp.eq.s32.totalorder %s30, 1
      %p329 = por %p327, %p328
      %p331 = scmp.ne.s32.totalorder %s316, %s330
      %p332 = scmp.eq.s32.totalorder %s30, 0
      %p333 = por %p331, %p332
      %s335 = sadd.s32 %s334, 1
      %p338 = scmp.eq.s32.totalorder %s24, 1
      %p339 = scmp.ne.s32.totalorder %s334, %s336
      %p340 = scmp.eq.s32.totalorder %s24, 0
      %p341 = por %p339, %p340
      %p342 = scmp.ne.s32.totalorder %s334, %s336
      %p343 = scmp.eq.s32.totalorder %s29, 1
      %p344 = por %p342, %p343
      %p345 = scmp.ne.s32.totalorder %s336, %s337
      %p346 = scmp.eq.s32.totalorder %s29, 0
      %p347 = por %p345, %p346
      %p348 = scmp.ne.s32.totalorder %s336, %s337
      %p349 = scmp.eq.s32.totalorder %s30, 1
      %p350 = por %p348, %p349
      %p352 = scmp.ne.s32.totalorder %s337, %s351
      %p353 = scmp.eq.s32.totalorder %s30, 0
      %p354 = por %p352, %p353
      %s356 = sadd.s32 %s355, 1
      %p359 = scmp.eq.s32.totalorder %s24, 1
      %p360 = scmp.ne.s32.totalorder %s355, %s357
      %p361 = scmp.eq.s32.totalorder %s24, 0
      %p362 = por %p360, %p361
      %p363 = scmp.ne.s32.totalorder %s355, %s357
      %p364 = scmp.eq.s32.totalorder %s29, 1
      %p365 = por %p363, %p364
      %p366 = scmp.ne.s32.totalorder %s357, %s358
      %p367 = scmp.eq.s32.totalorder %s29, 0
      %p368 = por %p366, %p367
      %p369 = scmp.ne.s32.totalorder %s357, %s358
      %p370 = scmp.eq.s32.totalorder %s30, 1
      %p371 = por %p369, %p370
      %p373 = scmp.ne.s32.totalorder %s358, %s372
      %p374 = scmp.eq.s32.totalorder %s30, 0
      %p375 = por %p373, %p374
      %s376 = ssub.s32 %s31, %s43
      %s377 = ssub.s32 %s32, %s39
      %s378 = sor.u32 %s376, %s377
      %p379 = scmp.eq.s32.totalorder %s378, 0
      %s381 = sadd.s32 %s380, 1
      %s382 = scalar_select %p379, %s380, %s381
      %p385 = pneg %p379
      %p386 = scmp.eq.s32.totalorder %s24, 1
      %p387 = por %p385, %p386
      %p388 = scmp.ne.s32.totalorder %s380, %s383
      %p389 = scmp.eq.s32.totalorder %s24, 0
      %p390 = por %p388, %p389
      %p391 = scmp.ne.s32.totalorder %s380, %s383
      %p392 = scmp.eq.s32.totalorder %s29, 1
      %p393 = por %p391, %p392
      %p394 = scmp.ne.s32.totalorder %s383, %s384
      %p395 = scmp.eq.s32.totalorder %s29, 0
      %p396 = por %p394, %p395
      %p397 = scmp.ne.s32.totalorder %s383, %s384
      %p398 = scmp.eq.s32.totalorder %s30, 1
      %p399 = por %p397, %p398
      %p401 = scmp.ne.s32.totalorder %s384, %s400
      %p402 = scmp.eq.s32.totalorder %s30, 0
      %p403 = por %p401, %p402
      %p404 = scmp.le.s32.totalorder 1, %s24
      %p405 = scmp.lt.s32.totalorder %s24, 3
      %p406 = pnand %p404, %p405
      %p407 = pneg %p406
      // Predicated region
      $region9: #{encoder_layer.3} parent=5 // pred_check
        _
      $region10: #{encoder_layer.3} parent=5 // pred_check_branch
        %409 = sbr.rel (%p406) target = $region12
      $region11: #{encoder_layer.3} parent=5 // pred_region
        %s410 = ssub.s32 %s24, 1
        // Predicated region
        $region13: #{encoder_layer.3} parent=11 // pred_check
          %p411 = pneg %p137
        $region14: #{encoder_layer.3} parent=11 // pred_check_branch
          %413 = sbr.rel (%p411) target = $region16
        $region15: #{encoder_layer.3} parent=11 // pred_region
          _
        $region16: #{encoder_layer.3} parent=11 // pred_fallthru
          _
        // Predicated region
        $region17: #{encoder_layer.3} parent=11 // pred_check
          %p414 = pneg %p158
        $region18: #{encoder_layer.3} parent=11 // pred_check_branch
          %416 = sbr.rel (%p414) target = $region20
        $region19: #{encoder_layer.3} parent=11 // pred_region
          _
        $region20: #{encoder_layer.3} parent=11 // pred_fallthru
          _
        // Predicated region
        $region21: #{encoder_layer.3} parent=11 // pred_check
          %p417 = pneg %p179
        $region22: #{encoder_layer.3} parent=11 // pred_check_branch
          %419 = sbr.rel (%p417) target = $region24
        $region23: #{encoder_layer.3} parent=11 // pred_region
          _
        $region24: #{encoder_layer.3} parent=11 // pred_fallthru
          _
        // Predicated region
        $region25: #{encoder_layer.3} parent=11 // pred_check
          %p420 = pneg %p200
        $region26: #{encoder_layer.3} parent=11 // pred_check_branch
          %422 = sbr.rel (%p420) target = $region28
        $region27: #{encoder_layer.3} parent=11 // pred_region
          _
        $region28: #{encoder_layer.3} parent=11 // pred_fallthru
          _
        // Predicated region
        $region29: #{encoder_layer.3} parent=11 // pred_check
          %p423 = pneg %p221
        $region30: #{encoder_layer.3} parent=11 // pred_check_branch
          %425 = sbr.rel (%p423) target = $region32
        $region31: #{encoder_layer.3} parent=11 // pred_region
          _
        $region32: #{encoder_layer.3} parent=11 // pred_fallthru
          _
        // Predicated region
        $region33: #{encoder_layer.3} parent=11 // pred_check
          %p426 = pneg %p242
        $region34: #{encoder_layer.3} parent=11 // pred_check_branch
          %428 = sbr.rel (%p426) target = $region36
        $region35: #{encoder_layer.3} parent=11 // pred_region
          _
        $region36: #{encoder_layer.3} parent=11 // pred_fallthru
          _
        // Predicated region
        $region37: #{encoder_layer.3} parent=11 // pred_check
          %p429 = pneg %p263
        $region38: #{encoder_layer.3} parent=11 // pred_check_branch
          %431 = sbr.rel (%p429) target = $region40
        $region39: #{encoder_layer.3} parent=11 // pred_region
          _
        $region40: #{encoder_layer.3} parent=11 // pred_fallthru
          _
        // Predicated region
        $region41: #{encoder_layer.3} parent=11 // pred_check
          %p432 = pneg %p284
        $region42: #{encoder_layer.3} parent=11 // pred_check_branch
          %434 = sbr.rel (%p432) target = $region44
        $region43: #{encoder_layer.3} parent=11 // pred_region
          _
        $region44: #{encoder_layer.3} parent=11 // pred_fallthru
          _
        // Predicated region
        $region45: #{encoder_layer.3} parent=11 // pred_check
          %p435 = pneg %p305
        $region46: #{encoder_layer.3} parent=11 // pred_check_branch
          %437 = sbr.rel (%p435) target = $region48
        $region47: #{encoder_layer.3} parent=11 // pred_region
          _
        $region48: #{encoder_layer.3} parent=11 // pred_fallthru
          _
        // Predicated region
        $region49: #{encoder_layer.3} parent=11 // pred_check
          %p438 = pneg %p326
        $region50: #{encoder_layer.3} parent=11 // pred_check_branch
          %440 = sbr.rel (%p438) target = $region52
        $region51: #{encoder_layer.3} parent=11 // pred_region
          _
        $region52: #{encoder_layer.3} parent=11 // pred_fallthru
          _
        // Predicated region
        $region53: #{encoder_layer.3} parent=11 // pred_check
          %p441 = pneg %p347
        $region54: #{encoder_layer.3} parent=11 // pred_check_branch
          %443 = sbr.rel (%p441) target = $region56
        $region55: #{encoder_layer.3} parent=11 // pred_region
          _
        $region56: #{encoder_layer.3} parent=11 // pred_fallthru
          _
        // Predicated region
        $region57: #{encoder_layer.3} parent=11 // pred_check
          %p444 = pneg %p368
        $region58: #{encoder_layer.3} parent=11 // pred_check_branch
          %446 = sbr.rel (%p444) target = $region60
        $region59: #{encoder_layer.3} parent=11 // pred_region
          _
        $region60: #{encoder_layer.3} parent=11 // pred_fallthru
          _
      $region12: #{encoder_layer.3} parent=5 // pred_fallthru
        _
      %p447 = scmp.lt.s32.totalorder %s24, 2
      // Predicated region
      $region61: #{encoder_layer.3} parent=5 // pred_check
        %p448 = pneg %p447
      $region62: #{encoder_layer.3} parent=5 // pred_check_branch
        %450 = sbr.rel (%p448) target = $region64
      $region63: #{encoder_layer.3} parent=5 // pred_region
        // Predicated region
        $region65: #{encoder_layer.3} parent=63 // pred_check
          %p451 = pneg %p58
        $region66: #{encoder_layer.3} parent=63 // pred_check_branch
          %453 = sbr.rel (%p451) target = $region68
        $region67: #{encoder_layer.3} parent=63 // pred_region
          %p454 = scmp.lt.s32.totalorder %s31, 1
          %s455 = scalar_select %p454, %s31, 1
          %p456 = scmp.lt.s32.totalorder %s32, 0
          %s457 = scalar_select %p456, %s32, 0
          %s458 = sadd.s32 %s457, %s455
          %s459 = smul.addr %s458, 8
          %s460 = scalar_lea.vmem %s0, %s459
        $region68: #{encoder_layer.3} parent=63 // pred_fallthru
          _
        // Predicated region
        $region69: #{encoder_layer.3} parent=63 // pred_check
          %p461 = pneg %p84
        $region70: #{encoder_layer.3} parent=63 // pred_check_branch
          %463 = sbr.rel (%p461) target = $region72
        $region71: #{encoder_layer.3} parent=63 // pred_region
          %p464 = scmp.lt.s32.totalorder %s31, 1
          %s465 = scalar_select %p464, %s31, 1
          %s466 = smul.addr %s465, 4
          %s467 = scalar_lea.vmem %s1, %s466
        $region72: #{encoder_layer.3} parent=63 // pred_fallthru
          _
        // Predicated region
        $region73: #{encoder_layer.3} parent=63 // pred_check
          %p468 = pneg %p110
        $region74: #{encoder_layer.3} parent=63 // pred_check_branch
          %470 = sbr.rel (%p468) target = $region76
        $region75: #{encoder_layer.3} parent=63 // pred_region
          %p471 = scmp.lt.s32.totalorder %s31, 1
          %s472 = scalar_select %p471, %s31, 1
          %s473 = smul.addr %s472, 4
          %s474 = scalar_lea.vmem %s2, %s473
        $region76: #{encoder_layer.3} parent=63 // pred_fallthru
          _
      $region64: #{encoder_layer.3} parent=5 // pred_fallthru
        _
      %p475 = scmp.le.s32.totalorder 1, %s24
      %p476 = scmp.lt.s32.totalorder %s24, 3
      %p477 = pnand %p475, %p476
      %p478 = pneg %p477
      // Predicated region
      $region77: #{encoder_layer.3} parent=5 // pred_check
        _
      $region78: #{encoder_layer.3} parent=5 // pred_check_branch
        %480 = sbr.rel (%p477) target = $region80
      $region79: #{encoder_layer.3} parent=5 // pred_region
        %s481 = ssub.s32 %s24, 1
        %p482 = scmp.lt.s32.totalorder %s33, 1
        %s483 = scalar_select %p482, %s33, 1
        %p484 = scmp.lt.s32.totalorder %s34, 0
        %s485 = scalar_select %p484, %s34, 0
        %s486 = sadd.s32 %s485, %s483
        %s487 = smul.addr %s486, 8
        %s488 = scalar_lea.vmem %s0, %s487
        %p489 = pneg %p64
        %p490 = pneg %p61
        %p491 = scmp.lt.s32.totalorder %s33, 1
        %s492 = scalar_select %p491, %s33, 1
        %s493 = smul.addr %s492, 4
        %s494 = scalar_lea.vmem %s1, %s493
        %p495 = pneg %p90
        %p496 = pneg %p87
        %p497 = scmp.lt.s32.totalorder %s33, 1
        %s498 = scalar_select %p497, %s33, 1
        %s499 = smul.addr %s498, 4
        %s500 = scalar_lea.vmem %s2, %s499
        %p501 = pneg %p116
        %p502 = pneg %p113
        %p503 = pneg %p137
        %p504 = pneg %p134
        %p505 = pneg %p158
        %p506 = pneg %p155
        %p507 = pneg %p179
        %p508 = pneg %p176
        %p509 = pneg %p200
        %p510 = pneg %p197
        %p511 = pneg %p221
        %p512 = pneg %p218
        %p513 = pneg %p242
        %p514 = pneg %p239
        %p515 = pneg %p263
        %p516 = pneg %p260
        %p517 = pneg %p284
        %p518 = pneg %p281
        %p519 = pneg %p305
        %p520 = pneg %p302
        %p521 = pneg %p326
        %p522 = pneg %p323
        %p523 = pneg %p347
        %p524 = pneg %p344
        %p525 = pneg %p368
        %p526 = pneg %p365
        %p527 = pneg %p396
        %p528 = pneg %p393
        %s529 = sand.u32 %s383, 1
        %s530 = scalar_lea.sflag [#allocation4], %s529
        %s531 = sand.u32 %s383, 1
        %s532 = smul.addr %s531, 8
        %s533 = scalar_lea.vmem [#allocation3], %s532
        %p534 = scmp.lt.s32.totalorder %s33, 1
        %s535 = scalar_select %p534, %s33, 1
        %p536 = scmp.lt.s32.totalorder %s34, 0
        %s537 = scalar_select %p536, %s34, 0
        %s538 = sadd.s32 %s537, %s535
        %s539 = smul.addr %s538, 8
        %s540 = scalar_lea.vmem %s0, %s539
        %p541 = scmp.lt.s32.totalorder %s33, 1
        %s542 = scalar_select %p541, %s33, 1
        %s543 = smul.addr %s542, 4
        %s544 = scalar_lea.vmem %s1, %s543
        %p545 = scmp.lt.s32.totalorder %s33, 1
        %s546 = scalar_select %p545, %s33, 1
        %s547 = smul.addr %s546, 4
        %s548 = scalar_lea.vmem %s2, %s547
        %v550 = vld [vmem:[%s540] sm:$0xff]
        %v551 = vld [vmem:[%s544] sm:$0xf]
        %v552 = vld [vmem:[%s548] sm:$0xf]
        %v553 = vpack.c.bf16 %v550, %v550
        %v554 = vld [vmem:[%s3] sm:$0xf]
        %v555 = vld [vmem:[%s3 + $0x4] sm:$0xf]
        %v556 = vld [vmem:[%s3 + $0x8] sm:$0xf]
        %v557 = vld [vmem:[%s3 + $0xc] sm:$0xf]
        %v558 = vld [vmem:[%s4] sm:$0x1]
        %v560 = vlaneseq
        %v561 = vshrl.u32 %v560, 7
        %v562 = vsub.s32 0, %v561
        %v563 = vrot.slane %v558, %v562
        %v569 = vunpack.c.l.b16 %v554
        %v570 = vunpack.c.l.b16 %v555
        %v571 = vunpack.c.l.b16 %v556
        %v572 = vunpack.c.l.b16 %v557
        %v573 = vpack.c.b16 %v570, %v569
        %v574 = vpack.c.b16 %v572, %v571
        %vm577 = vcmask 261120
        %v579 = vsel %vm577, %v553, 0
        %581 = vmatprep.subr.bf16.mxu0 0
        %582 = vmatpush1.bf16.msra.mxu0 0
        %583 = vmatprep.subr.bf16.mxu0 0
        %584 = vmatpush1.bf16.msra.mxu0 0
        %585 = vmatprep.subr.bf16.mxu0 0
        %586 = vmatpush1.bf16.msra.mxu0 0
        %587 = vmatprep.subr.bf16.mxu0 0
        %588 = vmatpush1.bf16.msra.mxu0 0
        %589 = vmatprep.subr.bf16.mxu0 0
        %590 = vmatpush1.bf16.msra.mxu0 0
        %591 = vmatprep.subr.bf16.mxu0 0
        %592 = vmatpush1.bf16.msra.mxu0 0
        %593 = vmatprep.subr.bf16.mxu0 0
        %594 = vmatpush1.bf16.msra.mxu0 %v574
        %595 = vmatprep.subr.bf16.mxu0 0
        %596 = vmatpush1.bf16.msra.mxu0 %v573
        %597 = vmatprep.subr.bf16.mxu0 0
        %598 = vmatpush2.bf16.msra.mxu0 0
        %599 = vmatprep.subr.bf16.mxu0 0
        %600 = vmatpush2.bf16.msra.mxu0 0
        %601 = vmatprep.subr.bf16.mxu0 0
        %602 = vmatpush2.bf16.msra.mxu0 0
        %603 = vmatprep.subr.bf16.mxu0 0
        %604 = vmatpush2.bf16.msra.mxu0 0
        %605 = vmatprep.subr.bf16.mxu0 0
        %606 = vmatpush2.bf16.msra.mxu0 0
        %607 = vmatprep.subr.bf16.mxu0 0
        %608 = vmatpush2.bf16.msra.mxu0 0
        %609 = vmatprep.subr.bf16.mxu0 0
        %610 = vmatpush2.bf16.msra.mxu0 0
        %611 = vmatprep.subr.bf16.mxu0 0
        %612 = vmatpush2.bf16.msra.mxu0 0
        %613 = vmatprep.mubr.bf16.mxu0 0
        %614 = vmatmul.mubr.bf16.gmra.mxu0 %v579
        %v615 = vpop.f32.mrf.mxu0
        %v616 = vadd.f32 %v563, %v615
        %v617 = vpop.f32.mrf.mxu0
        %v618 = vpop.f32.mrf.mxu0
        %v619 = vpop.f32.mrf.mxu0
        %620 = vdwg.mxu0
        %v621 = vpack.c.bf16 %v616, %v616
        %vm622 = vcmask 64512
        %v624 = vsel %vm622, %v621, 0
        %v627 = vsel %vm622, %v551, 0
        %629 = vmatprep.subr.bf16.mxu0 0
        %630 = vmatpush1.bf16.xpose.msra.mxu0 0
        %631 = vmatprep.subr.bf16.mxu0 0
        %632 = vmatpush1.bf16.xpose.msra.mxu0 0
        %633 = vmatprep.subr.bf16.mxu0 0
        %634 = vmatpush1.bf16.xpose.msra.mxu0 0
        %635 = vmatprep.subr.bf16.mxu0 0
        %636 = vmatpush1.bf16.xpose.msra.mxu0 0
        %637 = vmatprep.subr.bf16.mxu0 0
        %638 = vmatpush1.bf16.xpose.msra.mxu0 0
        %639 = vmatprep.subr.bf16.mxu0 0
        %640 = vmatpush1.bf16.xpose.msra.mxu0 0
        %641 = vmatprep.subr.bf16.mxu0 0
        %642 = vmatpush1.bf16.xpose.msra.mxu0 0
        %643 = vmatprep.subr.bf16.mxu0 0
        %644 = vmatpush1.bf16.xpose.msra.mxu0 %v627
        %645 = vmatprep.subr.bf16.mxu0 0
        %646 = vmatpush2.bf16.xpose.msra.mxu0 0
        %647 = vmatprep.subr.bf16.mxu0 0
        %648 = vmatpush2.bf16.xpose.msra.mxu0 0
        %649 = vmatprep.subr.bf16.mxu0 0
        %650 = vmatpush2.bf16.xpose.msra.mxu0 0
        %651 = vmatprep.subr.bf16.mxu0 0
        %652 = vmatpush2.bf16.xpose.msra.mxu0 0
        %653 = vmatprep.subr.bf16.mxu0 0
        %654 = vmatpush2.bf16.xpose.msra.mxu0 0
        %655 = vmatprep.subr.bf16.mxu0 0
        %656 = vmatpush2.bf16.xpose.msra.mxu0 0
        %657 = vmatprep.subr.bf16.mxu0 0
        %658 = vmatpush2.bf16.xpose.msra.mxu0 0
        %659 = vmatprep.subr.bf16.mxu0 0
        %660 = vmatpush2.bf16.xpose.msra.mxu0 0
        %661 = vmatprep.mubr.bf16.mxu0 0
        %662 = vmatmul.mubr.bf16.gmra.mxu0 %v624
        %v663 = vpop.f32.mrf.mxu0
        %v664 = vadd.f32 0.0, %v663
        %v665 = vpop.f32.mrf.mxu0
        %v666 = vpop.f32.mrf.mxu0
        %v667 = vpop.f32.mrf.mxu0
        %668 = vdwg.mxu0
        %v669 = vmul.f32 %v664, 0.35355338
        %v670 = vsel %vm622, %v669, -inf
        %671 = vmax.xlane.f32.xlu0 %v670
        %v672 = vpop.xlane.xlu0 %671
        %v673 = vsub.f32 %v669, %v672
        %v674 = vmul.f32 %v673, 1.442695
        %v675 = vpow.pop %v674
        %v676 = vsel %vm622, %v675, 0.0
        %677 = vadd.xlane.f32.xlu0 %v676
        %v678 = vpop.xlane.xlu0 %677
        %v679 = vrcp.pop %v678
        %v680 = vmul.f32 %v675, %v679
        %v681 = vpack.c.bf16 %v680, %v680
        %v683 = vsel %vm622, %v681, 0
        %vm685 = vcmask 1043456
        %v687 = vsel %vm685, %v552, 0
        %689 = vmatprep.subr.bf16.mxu0 0
        %690 = vmatpush1.bf16.msra.mxu0 0
        %691 = vmatprep.subr.bf16.mxu0 0
        %692 = vmatpush1.bf16.msra.mxu0 0
        %693 = vmatprep.subr.bf16.mxu0 0
        %694 = vmatpush1.bf16.msra.mxu0 0
        %695 = vmatprep.subr.bf16.mxu0 0
        %696 = vmatpush1.bf16.msra.mxu0 0
        %697 = vmatprep.subr.bf16.mxu0 0
        %698 = vmatpush1.bf16.msra.mxu0 0
        %699 = vmatprep.subr.bf16.mxu0 0
        %700 = vmatpush1.bf16.msra.mxu0 0
        %701 = vmatprep.subr.bf16.mxu0 0
        %702 = vmatpush1.bf16.msra.mxu0 0
        %703 = vmatprep.subr.bf16.mxu0 0
        %704 = vmatpush1.bf16.msra.mxu0 %v687
        %705 = vmatprep.subr.bf16.mxu0 0
        %706 = vmatpush2.bf16.msra.mxu0 0
        %707 = vmatprep.subr.bf16.mxu0 0
        %708 = vmatpush2.bf16.msra.mxu0 0
        %709 = vmatprep.subr.bf16.mxu0 0
        %710 = vmatpush2.bf16.msra.mxu0 0
        %711 = vmatprep.subr.bf16.mxu0 0
        %712 = vmatpush2.bf16.msra.mxu0 0
        %713 = vmatprep.subr.bf16.mxu0 0
        %714 = vmatpush2.bf16.msra.mxu0 0
        %715 = vmatprep.subr.bf16.mxu0 0
        %716 = vmatpush2.bf16.msra.mxu0 0
        %717 = vmatprep.subr.bf16.mxu0 0
        %718 = vmatpush2.bf16.msra.mxu0 0
        %719 = vmatprep.subr.bf16.mxu0 0
        %720 = vmatpush2.bf16.msra.mxu0 0
        %721 = vmatprep.mubr.bf16.mxu0 0
        %722 = vmatmul.mubr.bf16.gmra.mxu0 %v683
        %v723 = vpop.f32.mrf.mxu0
        %v724 = vadd.f32 0.0, %v723
        %v725 = vpop.f32.mrf.mxu0
        %v726 = vpop.f32.mrf.mxu0
        %v727 = vpop.f32.mrf.mxu0
        %728 = vdwg.mxu0
        %730 = vrot.lane.b32.xlu0 %v621, 120
        %v731 = vpop.permute.xlu0 %730
        %v733 = vunpack.c.l.b16 %v551
        %v734 = vpack.c.b16 %v733, %v733
        %735 = vrot.lane.b32.xlu0 %v734, 120
        %v736 = vpop.permute.xlu0 %735
        %v738 = vsel %vm622, %v731, 0
        %v741 = vsel %vm622, %v736, 0
        %743 = vmatprep.subr.bf16.mxu0 0
        %744 = vmatpush1.bf16.xpose.msra.mxu0 0
        %745 = vmatprep.subr.bf16.mxu0 0
        %746 = vmatpush1.bf16.xpose.msra.mxu0 0
        %747 = vmatprep.subr.bf16.mxu0 0
        %748 = vmatpush1.bf16.xpose.msra.mxu0 0
        %749 = vmatprep.subr.bf16.mxu0 0
        %750 = vmatpush1.bf16.xpose.msra.mxu0 0
        %751 = vmatprep.subr.bf16.mxu0 0
        %752 = vmatpush1.bf16.xpose.msra.mxu0 0
        %753 = vmatprep.subr.bf16.mxu0 0
        %754 = vmatpush1.bf16.xpose.msra.mxu0 0
        %755 = vmatprep.subr.bf16.mxu0 0
        %756 = vmatpush1.bf16.xpose.msra.mxu0 0
        %757 = vmatprep.subr.bf16.mxu0 0
        %758 = vmatpush1.bf16.xpose.msra.mxu0 %v741
        %759 = vmatprep.subr.bf16.mxu0 0
        %760 = vmatpush2.bf16.xpose.msra.mxu0 0
        %761 = vmatprep.subr.bf16.mxu0 0
        %762 = vmatpush2.bf16.xpose.msra.mxu0 0
        %763 = vmatprep.subr.bf16.mxu0 0
        %764 = vmatpush2.bf16.xpose.msra.mxu0 0
        %765 = vmatprep.subr.bf16.mxu0 0
        %766 = vmatpush2.bf16.xpose.msra.mxu0 0
        %767 = vmatprep.subr.bf16.mxu0 0
        %768 = vmatpush2.bf16.xpose.msra.mxu0 0
        %769 = vmatprep.subr.bf16.mxu0 0
        %770 = vmatpush2.bf16.xpose.msra.mxu0 0
        %771 = vmatprep.subr.bf16.mxu0 0
        %772 = vmatpush2.bf16.xpose.msra.mxu0 0
        %773 = vmatprep.subr.bf16.mxu0 0
        %774 = vmatpush2.bf16.xpose.msra.mxu0 0
        %775 = vmatprep.mubr.bf16.mxu0 0
        %776 = vmatmul.mubr.bf16.gmra.mxu0 %v738
        %v777 = vpop.f32.mrf.mxu0
        %v778 = vadd.f32 0.0, %v777
        %v779 = vpop.f32.mrf.mxu0
        %v780 = vpop.f32.mrf.mxu0
        %v781 = vpop.f32.mrf.mxu0
        %782 = vdwg.mxu0
        %v783 = vmul.f32 %v778, 0.35355338
        %v784 = vsel %vm622, %v783, -inf
        %785 = vmax.xlane.f32.xlu0 %v784
        %v786 = vpop.xlane.xlu0 %785
        %v787 = vsub.f32 %v783, %v786
        %v788 = vmul.f32 %v787, 1.442695
        %v789 = vpow.pop %v788
        %v790 = vsel %vm622, %v789, 0.0
        %791 = vadd.xlane.f32.xlu0 %v790
        %v792 = vpop.xlane.xlu0 %791
        %v793 = vrcp.pop %v792
        %v794 = vmul.f32 %v789, %v793
        %v795 = vpack.c.bf16 %v794, %v794
        %v797 = vunpack.c.l.b16 %v552
        %v798 = vpack.c.b16 %v797, %v797
        %799 = vrot.lane.b32.xlu0 %v798, 120
        %v800 = vpop.permute.xlu0 %799
        %v802 = vsel %vm622, %v795, 0
        %v805 = vsel %vm685, %v800, 0
        %807 = vmatprep.subr.bf16.mxu0 0
        %808 = vmatpush1.bf16.msra.mxu0 0
        %809 = vmatprep.subr.bf16.mxu0 0
        %810 = vmatpush1.bf16.msra.mxu0 0
        %811 = vmatprep.subr.bf16.mxu0 0
        %812 = vmatpush1.bf16.msra.mxu0 0
        %813 = vmatprep.subr.bf16.mxu0 0
        %814 = vmatpush1.bf16.msra.mxu0 0
        %815 = vmatprep.subr.bf16.mxu0 0
        %816 = vmatpush1.bf16.msra.mxu0 0
        %817 = vmatprep.subr.bf16.mxu0 0
        %818 = vmatpush1.bf16.msra.mxu0 0
        %819 = vmatprep.subr.bf16.mxu0 0
        %820 = vmatpush1.bf16.msra.mxu0 0
        %821 = vmatprep.subr.bf16.mxu0 0
        %822 = vmatpush1.bf16.msra.mxu0 %v805
        %823 = vmatprep.subr.bf16.mxu0 0
        %824 = vmatpush2.bf16.msra.mxu0 0
        %825 = vmatprep.subr.bf16.mxu0 0
        %826 = vmatpush2.bf16.msra.mxu0 0
        %827 = vmatprep.subr.bf16.mxu0 0
        %828 = vmatpush2.bf16.msra.mxu0 0
        %829 = vmatprep.subr.bf16.mxu0 0
        %830 = vmatpush2.bf16.msra.mxu0 0
        %831 = vmatprep.subr.bf16.mxu0 0
        %832 = vmatpush2.bf16.msra.mxu0 0
        %833 = vmatprep.subr.bf16.mxu0 0
        %834 = vmatpush2.bf16.msra.mxu0 0
        %835 = vmatprep.subr.bf16.mxu0 0
        %836 = vmatpush2.bf16.msra.mxu0 0
        %837 = vmatprep.subr.bf16.mxu0 0
        %838 = vmatpush2.bf16.msra.mxu0 0
        %839 = vmatprep.mubr.bf16.mxu0 0
        %840 = vmatmul.mubr.bf16.gmra.mxu0 %v802
        %v841 = vpop.f32.mrf.mxu0
        %v842 = vadd.f32 0.0, %v841
        %v843 = vpop.f32.mrf.mxu0
        %v844 = vpop.f32.mrf.mxu0
        %v845 = vpop.f32.mrf.mxu0
        %846 = vdwg.mxu0
        %847 = vrot.lane.b32.xlu0 %v621, 112
        %v848 = vpop.permute.xlu0 %847
        %849 = vrot.lane.b32.xlu0 %v734, 112
        %v850 = vpop.permute.xlu0 %849
        %v852 = vsel %vm622, %v848, 0
        %v855 = vsel %vm622, %v850, 0
        %857 = vmatprep.subr.bf16.mxu0 0
        %858 = vmatpush1.bf16.xpose.msra.mxu0 0
        %859 = vmatprep.subr.bf16.mxu0 0
        %860 = vmatpush1.bf16.xpose.msra.mxu0 0
        %861 = vmatprep.subr.bf16.mxu0 0
        %862 = vmatpush1.bf16.xpose.msra.mxu0 0
        %863 = vmatprep.subr.bf16.mxu0 0
        %864 = vmatpush1.bf16.xpose.msra.mxu0 0
        %865 = vmatprep.subr.bf16.mxu0 0
        %866 = vmatpush1.bf16.xpose.msra.mxu0 0
        %867 = vmatprep.subr.bf16.mxu0 0
        %868 = vmatpush1.bf16.xpose.msra.mxu0 0
        %869 = vmatprep.subr.bf16.mxu0 0
        %870 = vmatpush1.bf16.xpose.msra.mxu0 0
        %871 = vmatprep.subr.bf16.mxu0 0
        %872 = vmatpush1.bf16.xpose.msra.mxu0 %v855
        %873 = vmatprep.subr.bf16.mxu0 0
        %874 = vmatpush2.bf16.xpose.msra.mxu0 0
        %875 = vmatprep.subr.bf16.mxu0 0
        %876 = vmatpush2.bf16.xpose.msra.mxu0 0
        %877 = vmatprep.subr.bf16.mxu0 0
        %878 = vmatpush2.bf16.xpose.msra.mxu0 0
        %879 = vmatprep.subr.bf16.mxu0 0
        %880 = vmatpush2.bf16.xpose.msra.mxu0 0
        %881 = vmatprep.subr.bf16.mxu0 0
        %882 = vmatpush2.bf16.xpose.msra.mxu0 0
        %883 = vmatprep.subr.bf16.mxu0 0
        %884 = vmatpush2.bf16.xpose.msra.mxu0 0
        %885 = vmatprep.subr.bf16.mxu0 0
        %886 = vmatpush2.bf16.xpose.msra.mxu0 0
        %887 = vmatprep.subr.bf16.mxu0 0
        %888 = vmatpush2.bf16.xpose.msra.mxu0 0
        %889 = vmatprep.mubr.bf16.mxu0 0
        %890 = vmatmul.mubr.bf16.gmra.mxu0 %v852
        %v891 = vpop.f32.mrf.mxu0
        %v892 = vadd.f32 0.0, %v891
        %v893 = vpop.f32.mrf.mxu0
        %v894 = vpop.f32.mrf.mxu0
        %v895 = vpop.f32.mrf.mxu0
        %896 = vdwg.mxu0
        %v897 = vmul.f32 %v892, 0.35355338
        %v898 = vsel %vm622, %v897, -inf
        %899 = vmax.xlane.f32.xlu0 %v898
        %v900 = vpop.xlane.xlu0 %899
        %v901 = vsub.f32 %v897, %v900
        %v902 = vmul.f32 %v901, 1.442695
        %v903 = vpow.pop %v902
        %v904 = vsel %vm622, %v903, 0.0
        %905 = vadd.xlane.f32.xlu0 %v904
        %v906 = vpop.xlane.xlu0 %905
        %v907 = vrcp.pop %v906
        %v908 = vmul.f32 %v903, %v907
        %v909 = vpack.c.bf16 %v908, %v908
        %910 = vrot.lane.b32.xlu0 %v798, 112
        %v911 = vpop.permute.xlu0 %910
        %v913 = vsel %vm622, %v909, 0
        %v916 = vsel %vm685, %v911, 0
        %918 = vmatprep.subr.bf16.mxu0 0
        %919 = vmatpush1.bf16.msra.mxu0 0
        %920 = vmatprep.subr.bf16.mxu0 0
        %921 = vmatpush1.bf16.msra.mxu0 0
        %922 = vmatprep.subr.bf16.mxu0 0
        %923 = vmatpush1.bf16.msra.mxu0 0
        %924 = vmatprep.subr.bf16.mxu0 0
        %925 = vmatpush1.bf16.msra.mxu0 0
        %926 = vmatprep.subr.bf16.mxu0 0
        %927 = vmatpush1.bf16.msra.mxu0 0
        %928 = vmatprep.subr.bf16.mxu0 0
        %929 = vmatpush1.bf16.msra.mxu0 0
        %930 = vmatprep.subr.bf16.mxu0 0
        %931 = vmatpush1.bf16.msra.mxu0 0
        %932 = vmatprep.subr.bf16.mxu0 0
        %933 = vmatpush1.bf16.msra.mxu0 %v916
        %934 = vmatprep.subr.bf16.mxu0 0
        %935 = vmatpush2.bf16.msra.mxu0 0
        %936 = vmatprep.subr.bf16.mxu0 0
        %937 = vmatpush2.bf16.msra.mxu0 0
        %938 = vmatprep.subr.bf16.mxu0 0
        %939 = vmatpush2.bf16.msra.mxu0 0
        %940 = vmatprep.subr.bf16.mxu0 0
        %941 = vmatpush2.bf16.msra.mxu0 0
        %942 = vmatprep.subr.bf16.mxu0 0
        %943 = vmatpush2.bf16.msra.mxu0 0
        %944 = vmatprep.subr.bf16.mxu0 0
        %945 = vmatpush2.bf16.msra.mxu0 0
        %946 = vmatprep.subr.bf16.mxu0 0
        %947 = vmatpush2.bf16.msra.mxu0 0
        %948 = vmatprep.subr.bf16.mxu0 0
        %949 = vmatpush2.bf16.msra.mxu0 0
        %950 = vmatprep.mubr.bf16.mxu0 0
        %951 = vmatmul.mubr.bf16.gmra.mxu0 %v913
        %v952 = vpop.f32.mrf.mxu0
        %v953 = vadd.f32 0.0, %v952
        %v954 = vpop.f32.mrf.mxu0
        %v955 = vpop.f32.mrf.mxu0
        %v956 = vpop.f32.mrf.mxu0
        %957 = vdwg.mxu0
        %958 = vrot.lane.b32.xlu0 %v621, 104
        %v959 = vpop.permute.xlu0 %958
        %960 = vrot.lane.b32.xlu0 %v734, 104
        %v961 = vpop.permute.xlu0 %960
        %v963 = vsel %vm622, %v959, 0
        %v966 = vsel %vm622, %v961, 0
        %968 = vmatprep.subr.bf16.mxu0 0
        %969 = vmatpush1.bf16.xpose.msra.mxu0 0
        %970 = vmatprep.subr.bf16.mxu0 0
        %971 = vmatpush1.bf16.xpose.msra.mxu0 0
        %972 = vmatprep.subr.bf16.mxu0 0
        %973 = vmatpush1.bf16.xpose.msra.mxu0 0
        %974 = vmatprep.subr.bf16.mxu0 0
        %975 = vmatpush1.bf16.xpose.msra.mxu0 0
        %976 = vmatprep.subr.bf16.mxu0 0
        %977 = vmatpush1.bf16.xpose.msra.mxu0 0
        %978 = vmatprep.subr.bf16.mxu0 0
        %979 = vmatpush1.bf16.xpose.msra.mxu0 0
        %980 = vmatprep.subr.bf16.mxu0 0
        %981 = vmatpush1.bf16.xpose.msra.mxu0 0
        %982 = vmatprep.subr.bf16.mxu0 0
        %983 = vmatpush1.bf16.xpose.msra.mxu0 %v966
        %984 = vmatprep.subr.bf16.mxu0 0
        %985 = vmatpush2.bf16.xpose.msra.mxu0 0
        %986 = vmatprep.subr.bf16.mxu0 0
        %987 = vmatpush2.bf16.xpose.msra.mxu0 0
        %988 = vmatprep.subr.bf16.mxu0 0
        %989 = vmatpush2.bf16.xpose.msra.mxu0 0
        %990 = vmatprep.subr.bf16.mxu0 0
        %991 = vmatpush2.bf16.xpose.msra.mxu0 0
        %992 = vmatprep.subr.bf16.mxu0 0
        %993 = vmatpush2.bf16.xpose.msra.mxu0 0
        %994 = vmatprep.subr.bf16.mxu0 0
        %995 = vmatpush2.bf16.xpose.msra.mxu0 0
        %996 = vmatprep.subr.bf16.mxu0 0
        %997 = vmatpush2.bf16.xpose.msra.mxu0 0
        %998 = vmatprep.subr.bf16.mxu0 0
        %999 = vmatpush2.bf16.xpose.msra.mxu0 0
        %1000 = vmatprep.mubr.bf16.mxu0 0
        %1001 = vmatmul.mubr.bf16.gmra.mxu0 %v963
        %v1002 = vpop.f32.mrf.mxu0
        %v1003 = vadd.f32 0.0, %v1002
        %v1004 = vpop.f32.mrf.mxu0
        %v1005 = vpop.f32.mrf.mxu0
        %v1006 = vpop.f32.mrf.mxu0
        %1007 = vdwg.mxu0
        %v1008 = vmul.f32 %v1003, 0.35355338
        %v1009 = vsel %vm622, %v1008, -inf
        %1010 = vmax.xlane.f32.xlu0 %v1009
        %v1011 = vpop.xlane.xlu0 %1010
        %v1012 = vsub.f32 %v1008, %v1011
        %v1013 = vmul.f32 %v1012, 1.442695
        %v1014 = vpow.pop %v1013
        %v1015 = vsel %vm622, %v1014, 0.0
        %1016 = vadd.xlane.f32.xlu0 %v1015
        %v1017 = vpop.xlane.xlu0 %1016
        %v1018 = vrcp.pop %v1017
        %v1019 = vmul.f32 %v1014, %v1018
        %v1020 = vpack.c.bf16 %v1019, %v1019
        %1021 = vrot.lane.b32.xlu0 %v798, 104
        %v1022 = vpop.permute.xlu0 %1021
        %v1024 = vsel %vm622, %v1020, 0
        %v1027 = vsel %vm685, %v1022, 0
        %1029 = vmatprep.subr.bf16.mxu0 0
        %1030 = vmatpush1.bf16.msra.mxu0 0
        %1031 = vmatprep.subr.bf16.mxu0 0
        %1032 = vmatpush1.bf16.msra.mxu0 0
        %1033 = vmatprep.subr.bf16.mxu0 0
        %1034 = vmatpush1.bf16.msra.mxu0 0
        %1035 = vmatprep.subr.bf16.mxu0 0
        %1036 = vmatpush1.bf16.msra.mxu0 0
        %1037 = vmatprep.subr.bf16.mxu0 0
        %1038 = vmatpush1.bf16.msra.mxu0 0
        %1039 = vmatprep.subr.bf16.mxu0 0
        %1040 = vmatpush1.bf16.msra.mxu0 0
        %1041 = vmatprep.subr.bf16.mxu0 0
        %1042 = vmatpush1.bf16.msra.mxu0 0
        %1043 = vmatprep.subr.bf16.mxu0 0
        %1044 = vmatpush1.bf16.msra.mxu0 %v1027
        %1045 = vmatprep.subr.bf16.mxu0 0
        %1046 = vmatpush2.bf16.msra.mxu0 0
        %1047 = vmatprep.subr.bf16.mxu0 0
        %1048 = vmatpush2.bf16.msra.mxu0 0
        %1049 = vmatprep.subr.bf16.mxu0 0
        %1050 = vmatpush2.bf16.msra.mxu0 0
        %1051 = vmatprep.subr.bf16.mxu0 0
        %1052 = vmatpush2.bf16.msra.mxu0 0
        %1053 = vmatprep.subr.bf16.mxu0 0
        %1054 = vmatpush2.bf16.msra.mxu0 0
        %1055 = vmatprep.subr.bf16.mxu0 0
        %1056 = vmatpush2.bf16.msra.mxu0 0
        %1057 = vmatprep.subr.bf16.mxu0 0
        %1058 = vmatpush2.bf16.msra.mxu0 0
        %1059 = vmatprep.subr.bf16.mxu0 0
        %1060 = vmatpush2.bf16.msra.mxu0 0
        %1061 = vmatprep.mubr.bf16.mxu0 0
        %1062 = vmatmul.mubr.bf16.gmra.mxu0 %v1024
        %v1063 = vpop.f32.mrf.mxu0
        %v1064 = vadd.f32 0.0, %v1063
        %v1065 = vpop.f32.mrf.mxu0
        %v1066 = vpop.f32.mrf.mxu0
        %v1067 = vpop.f32.mrf.mxu0
        %1068 = vdwg.mxu0
        %1070 = vrot.lane.b32.xlu0 %v842, 8
        %v1071 = vpop.permute.xlu0 %1070
        %1074 = vrot.lane.b32.xlu0 %v953, 16
        %v1075 = vpop.permute.xlu0 %1074
        %1078 = vrot.lane.b32.xlu0 %v1064, 24
        %v1079 = vpop.permute.xlu0 %1078
        %v1081 = vsel %vm622, %v724, %v1071
        %vm1082 = vcmask 130048
        %v1083 = vsel %vm1082, %v1081, %v1075
        %vm1084 = vcmask 195584
        %v1085 = vsel %vm1084, %v1083, %v1079
        %v1086 = vpack.c.bf16 %v1085, %v1085
        %v1087 = vld [vmem:[%s5] sm:$0xf]
        %v1088 = vld [vmem:[%s5 + $0x4] sm:$0xf]
        %v1089 = vld [vmem:[%s5 + $0x8] sm:$0xf]
        %v1090 = vld [vmem:[%s5 + $0xc] sm:$0xf]
        %v1091 = vld [vmem:[%s6] sm:$0x1]
        %v1093 = vlaneseq
        %v1094 = vshrl.u32 %v1093, 7
        %v1095 = vsub.s32 0, %v1094
        %v1096 = vrot.slane %v1091, %v1095
        %v1102 = vunpack.c.l.b16 %v1087
        %v1103 = vunpack.c.l.b16 %v1088
        %v1104 = vunpack.c.l.b16 %v1089
        %v1105 = vunpack.c.l.b16 %v1090
        %v1106 = vpack.c.b16 %v1103, %v1102
        %v1107 = vpack.c.b16 %v1105, %v1104
        %v1111 = vsel %vm577, %v1086, 0
        %1113 = vmatprep.subr.bf16.mxu0 0
        %1114 = vmatpush1.bf16.msra.mxu0 0
        %1115 = vmatprep.subr.bf16.mxu0 0
        %1116 = vmatpush1.bf16.msra.mxu0 0
        %1117 = vmatprep.subr.bf16.mxu0 0
        %1118 = vmatpush1.bf16.msra.mxu0 0
        %1119 = vmatprep.subr.bf16.mxu0 0
        %1120 = vmatpush1.bf16.msra.mxu0 0
        %1121 = vmatprep.subr.bf16.mxu0 0
        %1122 = vmatpush1.bf16.msra.mxu0 0
        %1123 = vmatprep.subr.bf16.mxu0 0
        %1124 = vmatpush1.bf16.msra.mxu0 0
        %1125 = vmatprep.subr.bf16.mxu0 0
        %1126 = vmatpush1.bf16.msra.mxu0 %v1107
        %1127 = vmatprep.subr.bf16.mxu0 0
        %1128 = vmatpush1.bf16.msra.mxu0 %v1106
        %1129 = vmatprep.subr.bf16.mxu0 0
        %1130 = vmatpush2.bf16.msra.mxu0 0
        %1131 = vmatprep.subr.bf16.mxu0 0
        %1132 = vmatpush2.bf16.msra.mxu0 0
        %1133 = vmatprep.subr.bf16.mxu0 0
        %1134 = vmatpush2.bf16.msra.mxu0 0
        %1135 = vmatprep.subr.bf16.mxu0 0
        %1136 = vmatpush2.bf16.msra.mxu0 0
        %1137 = vmatprep.subr.bf16.mxu0 0
        %1138 = vmatpush2.bf16.msra.mxu0 0
        %1139 = vmatprep.subr.bf16.mxu0 0
        %1140 = vmatpush2.bf16.msra.mxu0 0
        %1141 = vmatprep.subr.bf16.mxu0 0
        %1142 = vmatpush2.bf16.msra.mxu0 0
        %1143 = vmatprep.subr.bf16.mxu0 0
        %1144 = vmatpush2.bf16.msra.mxu0 0
        %1145 = vmatprep.mubr.bf16.mxu0 0
        %1146 = vmatmul.mubr.bf16.gmra.mxu0 %v1111
        %v1147 = vpop.f32.mrf.mxu0
        %v1148 = vadd.f32 %v1096, %v1147
        %v1149 = vpop.f32.mrf.mxu0
        %v1150 = vpop.f32.mrf.mxu0
        %v1151 = vpop.f32.mrf.mxu0
        %1152 = vdwg.mxu0
        %v1153 = vadd.f32 %v550, %v1148
        %v1154 = vsel %vm577, %v1153, 0.0
        %1155 = vadd.xlane.f32.xlu0 %v1154
        %v1156 = vpop.xlane.xlu0 %1155
        %v1157 = vrcp.pop 32.0
        %v1158 = vmul.f32 %v1156, %v1157
        %v1159 = vsub.f32 %v1153, %v1158
        %v1160 = vmul.f32 %v1159, %v1159
        %v1161 = vsel %vm577, %v1160, 0.0
        %1162 = vadd.xlane.f32.xlu0 %v1161
        %v1163 = vpop.xlane.xlu0 %1162
        %v1164 = vmul.f32 %v1163, %v1157
        %v1165 = vadd.f32 %v1164, 1e-05
        %v1166 = vrsqrt.pop %v1165
        %v1167 = vmul.f32 %v1159, %v1166
        %v1168 = vld [vmem:[%s7] sm:$0x1]
        %v1170 = vlaneseq
        %v1171 = vshrl.u32 %v1170, 7
        %v1172 = vsub.s32 0, %v1171
        %v1173 = vrot.slane %v1168, %v1172
        %v1175 = vmul.f32 %v1167, %v1173
        %v1176 = vld [vmem:[%s8] sm:$0x1]
        %v1178 = vlaneseq
        %v1179 = vshrl.u32 %v1178, 7
        %v1180 = vsub.s32 0, %v1179
        %v1181 = vrot.slane %v1176, %v1180
        %v1183 = vadd.f32 %v1175, %v1181
        %v1184 = vpack.c.bf16 %v1183, %v1183
        %v1185 = vld [vmem:[%s9] sm:$0xf]
        %v1186 = vld [vmem:[%s9 + $0x4] sm:$0xf]
        %v1187 = vld [vmem:[%s9 + $0x8] sm:$0xf]
        %v1188 = vld [vmem:[%s9 + $0xc] sm:$0xf]
        %v1189 = vld [vmem:[%s10] sm:$0x1]
        %v1191 = vlaneseq
        %v1192 = vshrl.u32 %v1191, 7
        %v1193 = vsub.s32 0, %v1192
        %v1194 = vrot.slane %v1189, %v1193
        %v1200 = vunpack.c.l.b16 %v1185
        %v1201 = vunpack.c.l.b16 %v1186
        %v1202 = vunpack.c.l.b16 %v1187
        %v1203 = vunpack.c.l.b16 %v1188
        %v1204 = vpack.c.b16 %v1201, %v1200
        %v1205 = vpack.c.b16 %v1203, %v1202
        %v1209 = vsel %vm577, %v1184, 0
        %1211 = vmatprep.subr.bf16.mxu0 0
        %1212 = vmatpush1.bf16.msra.mxu0 0
        %1213 = vmatprep.subr.bf16.mxu0 0
        %1214 = vmatpush1.bf16.msra.mxu0 0
        %1215 = vmatprep.subr.bf16.mxu0 0
        %1216 = vmatpush1.bf16.msra.mxu0 0
        %1217 = vmatprep.subr.bf16.mxu0 0
        %1218 = vmatpush1.bf16.msra.mxu0 0
        %1219 = vmatprep.subr.bf16.mxu0 0
        %1220 = vmatpush1.bf16.msra.mxu0 0
        %1221 = vmatprep.subr.bf16.mxu0 0
        %1222 = vmatpush1.bf16.msra.mxu0 0
        %1223 = vmatprep.subr.bf16.mxu0 0
        %1224 = vmatpush1.bf16.msra.mxu0 %v1205
        %1225 = vmatprep.subr.bf16.mxu0 0
        %1226 = vmatpush1.bf16.msra.mxu0 %v1204
        %1227 = vmatprep.subr.bf16.mxu0 0
        %1228 = vmatpush2.bf16.msra.mxu0 0
        %1229 = vmatprep.subr.bf16.mxu0 0
        %1230 = vmatpush2.bf16.msra.mxu0 0
        %1231 = vmatprep.subr.bf16.mxu0 0
        %1232 = vmatpush2.bf16.msra.mxu0 0
        %1233 = vmatprep.subr.bf16.mxu0 0
        %1234 = vmatpush2.bf16.msra.mxu0 0
        %1235 = vmatprep.subr.bf16.mxu0 0
        %1236 = vmatpush2.bf16.msra.mxu0 0
        %1237 = vmatprep.subr.bf16.mxu0 0
        %1238 = vmatpush2.bf16.msra.mxu0 0
        %1239 = vmatprep.subr.bf16.mxu0 0
        %1240 = vmatpush2.bf16.msra.mxu0 0
        %1241 = vmatprep.subr.bf16.mxu0 0
        %1242 = vmatpush2.bf16.msra.mxu0 0
        %1243 = vmatprep.mubr.bf16.mxu0 0
        %1244 = vmatmul.mubr.bf16.gmra.mxu0 %v1209
        %v1245 = vpop.f32.mrf.mxu0
        %v1246 = vadd.f32 %v1194, %v1245
        %v1247 = vpop.f32.mrf.mxu0
        %v1248 = vpop.f32.mrf.mxu0
        %v1249 = vpop.f32.mrf.mxu0
        %1250 = vdwg.mxu0
        %v1251 = vmax.f32 %v1246, 0.0
        %v1252 = vpack.c.bf16 %v1251, %v1251
        %v1253 = vld [vmem:[%s11] sm:$0xf]
        %v1254 = vld [vmem:[%s11 + $0x4] sm:$0xf]
        %v1255 = vld [vmem:[%s11 + $0x8] sm:$0xf]
        %v1256 = vld [vmem:[%s11 + $0xc] sm:$0xf]
        %v1257 = vld [vmem:[%s11 + $0x10] sm:$0xf]
        %v1258 = vld [vmem:[%s11 + $0x14] sm:$0xf]
        %v1259 = vld [vmem:[%s11 + $0x18] sm:$0xf]
        %v1260 = vld [vmem:[%s11 + $0x1c] sm:$0xf]
        %v1261 = vld [vmem:[%s12] sm:$0x1]
        %v1263 = vlaneseq
        %v1264 = vshrl.u32 %v1263, 7
        %v1265 = vsub.s32 0, %v1264
        %v1266 = vrot.slane %v1261, %v1265
        %v1276 = vunpack.c.l.b16 %v1253
        %v1277 = vunpack.c.l.b16 %v1254
        %v1278 = vunpack.c.l.b16 %v1255
        %v1279 = vunpack.c.l.b16 %v1256
        %v1280 = vunpack.c.l.b16 %v1257
        %v1281 = vunpack.c.l.b16 %v1258
        %v1282 = vunpack.c.l.b16 %v1259
        %v1283 = vunpack.c.l.b16 %v1260
        %v1284 = vpack.c.b16 %v1277, %v1276
        %v1285 = vpack.c.b16 %v1279, %v1278
        %v1286 = vpack.c.b16 %v1281, %v1280
        %v1287 = vpack.c.b16 %v1283, %v1282
        %vm1292 = vcmask 523264
        %v1294 = vsel %vm1292, %v1252, 0
        %1296 = vmatprep.subr.bf16.mxu0 0
        %1297 = vmatpush1.bf16.msra.mxu0 0
        %1298 = vmatprep.subr.bf16.mxu0 0
        %1299 = vmatpush1.bf16.msra.mxu0 0
        %1300 = vmatprep.subr.bf16.mxu0 0
        %1301 = vmatpush1.bf16.msra.mxu0 0
        %1302 = vmatprep.subr.bf16.mxu0 0
        %1303 = vmatpush1.bf16.msra.mxu0 0
        %1304 = vmatprep.subr.bf16.mxu0 0
        %1305 = vmatpush1.bf16.msra.mxu0 %v1287
        %1306 = vmatprep.subr.bf16.mxu0 0
        %1307 = vmatpush1.bf16.msra.mxu0 %v1286
        %1308 = vmatprep.subr.bf16.mxu0 0
        %1309 = vmatpush1.bf16.msra.mxu0 %v1285
        %1310 = vmatprep.subr.bf16.mxu0 0
        %1311 = vmatpush1.bf16.msra.mxu0 %v1284
        %1312 = vmatprep.subr.bf16.mxu0 0
        %1313 = vmatpush2.bf16.msra.mxu0 0
        %1314 = vmatprep.subr.bf16.mxu0 0
        %1315 = vmatpush2.bf16.msra.mxu0 0
        %1316 = vmatprep.subr.bf16.mxu0 0
        %1317 = vmatpush2.bf16.msra.mxu0 0
        %1318 = vmatprep.subr.bf16.mxu0 0
        %1319 = vmatpush2.bf16.msra.mxu0 0
        %1320 = vmatprep.subr.bf16.mxu0 0
        %1321 = vmatpush2.bf16.msra.mxu0 0
        %1322 = vmatprep.subr.bf16.mxu0 0
        %1323 = vmatpush2.bf16.msra.mxu0 0
        %1324 = vmatprep.subr.bf16.mxu0 0
        %1325 = vmatpush2.bf16.msra.mxu0 0
        %1326 = vmatprep.subr.bf16.mxu0 0
        %1327 = vmatpush2.bf16.msra.mxu0 0
        %1328 = vmatprep.mubr.bf16.mxu0 0
        %1329 = vmatmul.mubr.bf16.gmra.mxu0 %v1294
        %v1330 = vpop.f32.mrf.mxu0
        %v1331 = vadd.f32 %v1266, %v1330
        %v1332 = vpop.f32.mrf.mxu0
        %v1333 = vpop.f32.mrf.mxu0
        %v1334 = vpop.f32.mrf.mxu0
        %1335 = vdwg.mxu0
        %v1336 = vadd.f32 %v1183, %v1331
        %v1337 = vsel %vm577, %v1336, 0.0
        %1338 = vadd.xlane.f32.xlu0 %v1337
        %v1339 = vpop.xlane.xlu0 %1338
        %v1340 = vmul.f32 %v1339, %v1157
        %v1341 = vsub.f32 %v1336, %v1340
        %v1342 = vmul.f32 %v1341, %v1341
        %v1343 = vsel %vm577, %v1342, 0.0
        %1344 = vadd.xlane.f32.xlu0 %v1343
        %v1345 = vpop.xlane.xlu0 %1344
        %v1346 = vmul.f32 %v1345, %v1157
        %v1347 = vadd.f32 %v1346, 1e-05
        %v1348 = vrsqrt.pop %v1347
        %v1349 = vmul.f32 %v1341, %v1348
        %v1350 = vld [vmem:[%s13] sm:$0x1]
        %v1352 = vlaneseq
        %v1353 = vshrl.u32 %v1352, 7
        %v1354 = vsub.s32 0, %v1353
        %v1355 = vrot.slane %v1350, %v1354
        %v1357 = vmul.f32 %v1349, %v1355
        %v1358 = vld [vmem:[%s14] sm:$0x1]
        %v1360 = vlaneseq
        %v1361 = vshrl.u32 %v1360, 7
        %v1362 = vsub.s32 0, %v1361
        %v1363 = vrot.slane %v1358, %v1362
        %v1365 = vadd.f32 %v1357, %v1363
        %1366 = vst.msk [vmem:[%s533] sm:$0xff] %vm577, %v1365
        %s1367 = sand.u32 %s383, 1
        %s1368 = scalar_lea.sflag [#allocation4], %s1367
        %s1369 = sand.u32 %s383, 1
        %s1370 = smul.addr %s1369, 8
        %s1371 = scalar_lea.vmem [#allocation3], %s1370
        // Predicated region
        $region81: #{encoder_layer.3} parent=79 // pred_check
          %p1372 = pneg %p393
        $region82: #{encoder_layer.3} parent=79 // pred_check_branch
          %1374 = sbr.rel (%p1372) target = $region84
        $region83: #{encoder_layer.3} parent=79 // pred_region
          %s1376 = ssub.s32 128, 128
          %1377 = vsyncadd %s1368, %s1376
          %s1378 = sadd.s32 %s34, %s33
          %s1379 = smul.addr %s1378, 128
          %s1380 = scalar_lea.hbm %s15, %s1379
          %s1382 = sshll.u32 %s1371, 4
          %s1383 = int_to_ptr.vmem [resolvable:$true] %s1382
          %1385 = dma.vmem_to_hbm [thread:$0]  %s1383, 128, %s1380, %s1368
        $region84: #{encoder_layer.3} parent=79 // pred_fallthru
          _
      $region80: #{encoder_layer.3} parent=5 // pred_fallthru
        _
      %p1386 = scmp.le.s32.totalorder 2, %s24
      // Predicated region
      $region85: #{encoder_layer.3} parent=5 // pred_check
        %p1387 = pneg %p1386
      $region86: #{encoder_layer.3} parent=5 // pred_check_branch
        %1389 = sbr.rel (%p1387) target = $region88
      $region87: #{encoder_layer.3} parent=5 // pred_region
        %s1390 = ssub.s32 %s24, 2
        // Predicated region
        $region89: #{encoder_layer.3} parent=87 // pred_check
          %p1391 = pneg %p399
        $region90: #{encoder_layer.3} parent=87 // pred_check_branch
          %1393 = sbr.rel (%p1391) target = $region92
        $region91: #{encoder_layer.3} parent=87 // pred_region
          %s1394 = sand.u32 %s384, 1
          %s1395 = scalar_lea.sflag [#allocation4], %s1394
          %s1396 = sand.u32 %s384, 1
          %s1397 = smul.addr %s1396, 8
          %s1398 = scalar_lea.vmem [#allocation3], %s1397
          %1399 = dma.done %s1395, 128
        $region92: #{encoder_layer.3} parent=87 // pred_fallthru
          _
      $region88: #{encoder_layer.3} parent=5 // pred_fallthru
        _
    $region6: #{encoder_layer.3} parent=1 // loop_footer
      %s28 = sadd.s32 1, %s24
    $region7: #{encoder_layer.3} parent=1 // loop_footer_branch
      %23 = sbr.rel target = $region3
    $region8: #{encoder_layer.3} parent=1 // loop_exit
      _
    %1400 = vsyncpa [#allocation4], 1
    %s1401 = scalar_lea.sflag [#allocation4], 1
    %1402 = vsyncpa %s1401, 1

</llo_original>
